<compile_context>
chip_gen: v6e
topology: v6e:2x2x1
jax: 0.10.0
libtpu: 0.0.40
codegen_flags: <defaults>
</compile_context>

<pallas_src>
import math
from functools import partial, lru_cache

import numpy as np
import jax
import jax.numpy as jnp
from jax.experimental import pallas as pl
from jax.experimental.pallas import tpu as pltpu


# ----------------------------------------------------------------------------
# sincos positional embeddings (host-side numpy, identical to reference)
# ----------------------------------------------------------------------------
def get_1d_sincos_pos_embed_from_grid(embed_dim, pos):
    assert embed_dim % 2 == 0
    omega = np.arange(embed_dim // 2, dtype=np.float32)
    omega /= embed_dim / 2.0
    omega = 1.0 / 10000 ** omega
    pos = pos.reshape(-1)
    out = np.einsum('m,d->md', pos, omega)
    emb_sin = np.sin(out)
    emb_cos = np.cos(out)
    return np.concatenate([emb_sin, emb_cos], axis=1)


def get_2d_sincos_pos_embed_from_grid(embed_dim, grid):
    assert embed_dim % 2 == 0
    emb_h = get_1d_sincos_pos_embed_from_grid(embed_dim // 2, grid[0])
    emb_w = get_1d_sincos_pos_embed_from_grid(embed_dim // 2, grid[1])
    return np.concatenate([emb_h, emb_w], axis=1)


def get_2d_sincos_pos_embed(embed_dim, grid_size, cls_token=False):
    if isinstance(grid_size, int):
        grid_h_size, grid_w_size = grid_size, grid_size
    else:
        grid_h_size, grid_w_size = grid_size[0], grid_size[1]
    grid_h = np.arange(grid_h_size, dtype=np.float32)
    grid_w = np.arange(grid_w_size, dtype=np.float32)
    grid = np.meshgrid(grid_w, grid_h)
    grid = np.stack(grid, axis=0)
    grid = grid.reshape([2, 1, grid_h_size, grid_w_size])
    pos_embed = get_2d_sincos_pos_embed_from_grid(embed_dim, grid)
    if cls_token:
        pos_embed = np.concatenate([np.zeros([1, embed_dim]), pos_embed], axis=0)
    return pos_embed


@lru_cache(maxsize=32)
def _cached_pos_embed(embed_dim, tgt_size):
    """Cache the adaptive 2D sincos pos-emb per (embed_dim, tgt_size)."""
    return jnp.asarray(get_2d_sincos_pos_embed(embed_dim, tgt_size), jnp.float32)


def _layernorm_jnp(v, g, b, eps=1e-6):
    m = jnp.mean(v, axis=-1, keepdims=True)
    c = v - m
    var = jnp.mean(c * c, axis=-1, keepdims=True)
    return c * jax.lax.rsqrt(var + eps) * g + b


# ----------------------------------------------------------------------------
# Fused per-image-slice resampler kernel (grid over B, all-VMEM resident)
# ----------------------------------------------------------------------------
def _resampler_kernel(
    x_ref,            # (S, kv_dim)  bf16  vision features for one image slice
    pos_k_ref,        # (S, E)       f32   pos_adapt @ Wk^T (precomputed)
    q_ref,            # (Q, E)       bf16  ((ln_q(query)+pos_q)@Wq^T+bq)*scale
    w_kv_ref,         # (kv_dim, E)  bf16  kv_proj weight (pre-transposed)
    lnkv_g_ref, lnkv_b_ref,    # (1, E) f32
    w_kvin_ref,       # (E, 2E)      bf16  [Wk^T | Wv^T]
    b_kvin_ref,       # (1, 2E)      f32   [bk | bv]
    w_o_ref,          # (E, E)       bf16  out_proj^T
    b_o_ref,          # (1, E)       f32
    lnp_g_ref, lnp_b_ref,      # (1, E) f32
    proj_ref,         # (E, E)       bf16  final projection
    o_ref,            # (Q, E)       bf16  output for this slice
    attn_sc,          # (Q, E)       f32   VMEM scratch (per-head writes)
    *, S, Q, H, Dh,
):
    E = H * Dh
    f32 = jnp.float32
    bf16 = jnp.bfloat16

    def layernorm(v, g, b):
        m = jnp.mean(v, axis=-1, keepdims=True)
        c = v - m
        var = jnp.mean(c * c, axis=-1, keepdims=True)
        return c * jax.lax.rsqrt(var + 1e-6) * g + b

    # --- kv_proj + ln_kv (fused epilogue, stays in VMEM/vregs) ---------------
    kv = jnp.dot(x_ref[...], w_kv_ref[...], preferred_element_type=f32)    # (S, E)
    kv = layernorm(kv, lnkv_g_ref[...], lnkv_b_ref[...])

    # --- merged K/V projection: one (S,E) x (E,2E) GEMM ----------------------
    kvp = jnp.dot(kv.astype(bf16), w_kvin_ref[...],
                  preferred_element_type=f32) + b_kvin_ref[...]             # (S, 2E)
    # adaptive pos-emb contribution to K folded in ONCE, casts done ONCE
    k_bf = (kvp[:, :E] + pos_k_ref[...]).astype(bf16)                       # (S, E)
    v_bf = kvp[:, E:].astype(bf16)                                          # (S, E)

    q_bf = q_ref[...]                                                       # (Q, E) bf16, scale folded

    # --- multi-head attention: static head unroll, 128-aligned slices,
    #     per-head results written straight into VMEM scratch (no concat) ----
    for h in range(H):
        d0 = h * Dh
        qh = q_bf[:, d0:d0 + Dh]                                            # (Q, Dh)
        kh = k_bf[:, d0:d0 + Dh]                                            # (S, Dh)
        vh = v_bf[:, d0:d0 + Dh]                                            # (S, Dh)

        s = jax.lax.dot_general(
            qh, kh,
            dimension_numbers=(((1,), (1,)), ((), ())),
            preferred_element_type=f32)                                     # (Q, S)
        s = s - jnp.max(s, axis=-1, keepdims=True)
        p = jnp.exp(s)
        p = p * pl.reciprocal(jnp.sum(p, axis=-1, keepdims=True), approx=True)
        attn_sc[:, d0:d0 + Dh] = jnp.dot(p.astype(bf16), vh,
                                         preferred_element_type=f32)       # (Q, Dh)

    # --- out_proj + ln_post + final E x E projection (fused epilogue) --------
    out = jnp.dot(attn_sc[...].astype(bf16), w_o_ref[...],
                  preferred_element_type=f32) + b_o_ref[...]
    out = layernorm(out, lnp_g_ref[...], lnp_b_ref[...])
    o_ref[...] = jnp.dot(out.astype(bf16), proj_ref[...],
                         preferred_element_type=f32).astype(o_ref.dtype)


# ----------------------------------------------------------------------------
# Resampler params / forward
# ----------------------------------------------------------------------------
def init_resampler_params(key, *, grid_size, embed_dim, num_heads, kv_dim):
    assert num_heads >= 1 and embed_dim % num_heads == 0
    num_queries = grid_size ** 2
    E = embed_dim
    Dh = E // num_heads
    ks = jax.random.split(key, 7)

    def tn(k, shape, std=0.02):
        # TODO(synk): trunc_normal_(std=0.02); plain normal*std used here.
        return jax.random.normal(k, shape, jnp.float32) * std

    wq = tn(ks[1], (E, E))
    wk = tn(ks[2], (E, E))
    wv = tn(ks[3], (E, E))
    wo = tn(ks[5], (E, E))

    query = tn(ks[0], (num_queries, E))
    pos_embed = jnp.asarray(get_2d_sincos_pos_embed(E, grid_size), jnp.float32)

    ln_q_g = jnp.ones((E,), jnp.float32)
    ln_q_b = jnp.zeros((E,), jnp.float32)
    b_q = jnp.zeros((E,), jnp.float32)

    # --- data-independent precompute (done once, not per forward) ------------
    # q_scaled = ((ln_q(query) + pos_embed) @ Wq^T + b_q) * 1/sqrt(Dh)
    q_in = _layernorm_jnp(query, ln_q_g, ln_q_b) + pos_embed
    q_scaled = ((q_in @ wq.T + b_q) * (Dh ** -0.5)).astype(jnp.bfloat16)

    params = {
        # precomputed / fused tensors used by the kernel
        "q_scaled": q_scaled,                                               # (Q, E) bf16
        "w_k_t": wk.T,                                                      # (E, E) f32 (pos_kp precompute)
        "w_kv_proj": tn(ks[4], (kv_dim, E)).astype(jnp.bfloat16),           # Linear(kv->E).T, no bias
        "w_kv_in": jnp.concatenate([wk.T, wv.T], axis=1).astype(jnp.bfloat16),  # (E, 2E)
        "b_kv_in": jnp.zeros((1, 2 * E), jnp.float32),
        "w_out": wo.T.astype(jnp.bfloat16),                                 # out_proj^T
        "b_out": jnp.zeros((1, E), jnp.float32),
        "ln_kv_g": jnp.ones((1, E), jnp.float32),
        "ln_kv_b": jnp.zeros((1, E), jnp.float32),
        "ln_post_g": jnp.ones((1, E), jnp.float32),
        "ln_post_b": jnp.zeros((1, E), jnp.float32),
        "proj": ((E ** -0.5) * jax.random.normal(ks[6], (E, E), jnp.float32)
                 ).astype(jnp.bfloat16),
    }
    meta = {"num_heads": num_heads, "embed_dim": E, "num_queries": num_queries}
    return params, meta


def resampler_forward(params, meta, x, pos_kp):
    """x: (B, S, kv_dim) vision features (post ViT); pos_kp: (S, E) cached
    pos_adapt @ Wk^T.  Returns (B, Q, E) bf16."""
    B, S, kv_dim = x.shape
    E = meta["embed_dim"]
    H = meta["num_heads"]
    Dh = E // H
    Q = meta["num_queries"]
    assert pos_kp.shape == (S, E)
    assert Dh % 128 == 0, "num_heads = embed_dim // 128 -> Dh == 128"

    x2 = x.reshape(B * S, kv_dim).astype(jnp.bfloat16)

    args = (
        x2, pos_kp, params["q_scaled"], params["w_kv_proj"],
        params["ln_kv_g"], params["ln_kv_b"],
        params["w_kv_in"], params["b_kv_in"],
        params["w_out"], params["b_out"],
        params["ln_post_g"], params["ln_post_b"],
        params["proj"],
    )

    const = lambda b: (0, 0)
    in_specs = [
        pl.BlockSpec((S, kv_dim), lambda b: (b, 0)),    # x: one image slice per grid step
        pl.BlockSpec((S, E), const),                    # pos_kp (grid-invariant)
        pl.BlockSpec((Q, E), const),                    # q_scaled
        pl.BlockSpec((kv_dim, E), const),               # w_kv_proj
        pl.BlockSpec((1, E), const),                    # ln_kv_g
        pl.BlockSpec((1, E), const),                    # ln_kv_b
        pl.BlockSpec((E, 2 * E), const),                # w_kv_in
        pl.BlockSpec((1, 2 * E), const),                # b_kv_in
        pl.BlockSpec((E, E), const),                    # w_out
        pl.BlockSpec((1, E), const),                    # b_out
        pl.BlockSpec((1, E), const),                    # ln_post_g
        pl.BlockSpec((1, E), const),                    # ln_post_b
        pl.BlockSpec((E, E), const),                    # proj
    ]
    out_specs = pl.BlockSpec((Q, E), lambda b: (b, 0))

    # ---- advisory cost estimate + VMEM budget --------------------------------
    arg_bytes = sum(int(np.prod(a.shape)) * a.dtype.itemsize for a in args)
    out_bytes = B * Q * E * 2
    flops = B * (
        2 * S * kv_dim * E            # kv_proj
        + 2 * S * E * (2 * E)         # K/V projection
        + 2 * H * Q * S * Dh * 2      # QK^T + PV
        + 2 * Q * E * E * 2           # out_proj + final proj
    )
    transcendentals = B * H * Q * S   # softmax exp
    cost = pl.CostEstimate(flops=flops, transcendentals=transcendentals,
                           bytes_accessed=arg_bytes + out_bytes)

    # generous headroom over (double-buffered) resident blocks + scratch
    resident = 2 * arg_bytes + 2 * out_bytes + Q * E * 4
    vmem_limit = int(min(max(2 * resident + (4 << 20), 32 << 20), 100 << 20))

    kernel = partial(_resampler_kernel, S=S, Q=Q, H=H, Dh=Dh)

    out = pl.pallas_call(
        kernel,
        out_shape=jax.ShapeDtypeStruct((B * Q, E), jnp.bfloat16),
        grid=(B,),
        in_specs=in_specs,
        out_specs=out_specs,
        scratch_shapes=[pltpu.VMEM((Q, E), jnp.float32)],
        compiler_params=pltpu.CompilerParams(
            dimension_semantics=("parallel",),       # image slices -> both TCs on v7x
            vmem_limit_bytes=vmem_limit,
        ),
        cost_estimate=cost,
    )(*args)

    return out.reshape(B, Q, E)


# ----------------------------------------------------------------------------
# MiniCPMV (Pallas-backed subset)
# ----------------------------------------------------------------------------
class MiniCPMVPallas:
    """Synthetic MiniCPMV: the resampler hot-path runs in a fused Pallas kernel
    (one grid step per image slice).

    # TODO(synk): timm SigLIP ViT backbone (vpm) not reimplemented; vision
    #             features are taken as input directly.
    # TODO(synk): MiniCPMForCausalLM decoder, Sampler, bicubic image slicing /
    #             tokenizer placeholder logic are host-side glue, omitted.
    """

    def __init__(self, *, query_num=16, embed_dim=256, vision_dim=128, seed=0):
        grid_size = int(math.sqrt(query_num))
        num_heads = embed_dim // 128          # as in MiniCPMV.init_resampler
        assert num_heads >= 1, "embed_dim must be >= 128 (num_heads = embed_dim // 128)"
        self.embed_dim = embed_dim
        self.vision_dim = vision_dim
        self.params, self.meta = init_resampler_params(
            jax.random.PRNGKey(seed),
            grid_size=grid_size,
            embed_dim=embed_dim,
            num_heads=num_heads,
            kv_dim=vision_dim,
        )
        self._pos_kp_cache = {}

    def _pos_kp(self, tgt_size):
        """pos_adapt @ Wk^T — data-independent, cached per image size."""
        key = (int(tgt_size[0]), int(tgt_size[1]))
        if key not in self._pos_kp_cache:
            pos = _cached_pos_embed(self.embed_dim, key)                    # (S, E) f32
            self._pos_kp_cache[key] = jnp.dot(
                pos, self.params["w_k_t"], preferred_element_type=jnp.float32)
        return self._pos_kp_cache[key]

    def get_vision_embedding(self, vision_features, tgt_size):
        # vision_features: (B, S, vision_dim) — post-ViT tokens per image slice
        B, S, _ = vision_features.shape
        assert S == int(tgt_size[0]) * int(tgt_size[1])
        pos_kp = self._pos_kp(tgt_size)
        return resampler_forward(self.params, self.meta, vision_features, pos_kp)


# ----------------------------------------------------------------------------
# main
# ----------------------------------------------------------------------------
if __name__ == "__main__":
    key = jax.random.PRNGKey(0)
    B, tgt_h, tgt_w = 2, 4, 4
    S = tgt_h * tgt_w
    vision_dim = 128
    embed_dim = 256      # num_heads = embed_dim // 128 = 2 (as in MiniCPMV)
    query_num = 16       # grid_size = 4 -> 16 learnable queries

    model = MiniCPMVPallas(
        query_num=query_num, embed_dim=embed_dim, vision_dim=vision_dim, seed=0
    )

    # synthetic ViT output features (what vpm.forward_features would produce)
    vision_features = jax.random.normal(key, (B, S, vision_dim), jnp.float32)

    out = model.get_vision_embedding(vision_features, (tgt_h, tgt_w))
    out = jax.block_until_ready(out)

    assert out.shape == (B, query_num, embed_dim)
    assert out.dtype == jnp.bfloat16
    assert bool(jnp.all(jnp.isfinite(out.astype(jnp.float32))))
    print("KERNEL_OK")
</pallas_src>

<mosaic_0001>
module attributes {stable_mosaic.version = 11 : i64} {
  func.func @_resampler_kernel(%arg0: i32, %arg1: memref<16x128xbf16, #tpu.memory_space<vmem>>, %arg2: memref<16x256xf32, #tpu.memory_space<vmem>>, %arg3: memref<16x256xbf16, #tpu.memory_space<vmem>>, %arg4: memref<128x256xbf16, #tpu.memory_space<vmem>>, %arg5: memref<1x256xf32, #tpu.memory_space<vmem>>, %arg6: memref<1x256xf32, #tpu.memory_space<vmem>>, %arg7: memref<256x512xbf16, #tpu.memory_space<vmem>>, %arg8: memref<1x512xf32, #tpu.memory_space<vmem>>, %arg9: memref<256x256xbf16, #tpu.memory_space<vmem>>, %arg10: memref<1x256xf32, #tpu.memory_space<vmem>>, %arg11: memref<1x256xf32, #tpu.memory_space<vmem>>, %arg12: memref<1x256xf32, #tpu.memory_space<vmem>>, %arg13: memref<256x256xbf16, #tpu.memory_space<vmem>>, %arg14: memref<16x256xbf16, #tpu.memory_space<vmem>>, %arg15: memref<16x256xf32, #tpu.memory_space<vmem>>) attributes {dimension_semantics = [#tpu.dimension_semantics<parallel>], iteration_bounds = array<i64: 2>, scalar_prefetch = 0 : i64, scratch_operands = 1 : i64, tpu.core_type = #tpu.core_type<tc>, window_params = [{transform_indices = @transform_0, window_bounds = array<i64: 16, 128>}, {pipeline_mode = #tpu.pipeline_mode<synchronous>, transform_indices = @transform_1, window_bounds = array<i64: 16, 256>}, {pipeline_mode = #tpu.pipeline_mode<synchronous>, transform_indices = @transform_2, window_bounds = array<i64: 16, 256>}, {pipeline_mode = #tpu.pipeline_mode<synchronous>, transform_indices = @transform_3, window_bounds = array<i64: 128, 256>}, {pipeline_mode = #tpu.pipeline_mode<synchronous>, transform_indices = @transform_4, window_bounds = array<i64: 1, 256>}, {pipeline_mode = #tpu.pipeline_mode<synchronous>, transform_indices = @transform_5, window_bounds = array<i64: 1, 256>}, {pipeline_mode = #tpu.pipeline_mode<synchronous>, transform_indices = @transform_6, window_bounds = array<i64: 256, 512>}, {pipeline_mode = #tpu.pipeline_mode<synchronous>, transform_indices = @transform_7, window_bounds = array<i64: 1, 512>}, {pipeline_mode = #tpu.pipeline_mode<synchronous>, transform_indices = @transform_8, window_bounds = array<i64: 256, 256>}, {pipeline_mode = #tpu.pipeline_mode<synchronous>, transform_indices = @transform_9, window_bounds = array<i64: 1, 256>}, {pipeline_mode = #tpu.pipeline_mode<synchronous>, transform_indices = @transform_10, window_bounds = array<i64: 1, 256>}, {pipeline_mode = #tpu.pipeline_mode<synchronous>, transform_indices = @transform_11, window_bounds = array<i64: 1, 256>}, {pipeline_mode = #tpu.pipeline_mode<synchronous>, transform_indices = @transform_12, window_bounds = array<i64: 256, 256>}, {transform_indices = @transform_13, window_bounds = array<i64: 16, 256>}]} {
    %c0 = arith.constant 0 : index
    %c0_0 = arith.constant 0 : index
    %0 = vector.load %arg1[%c0, %c0_0] : memref<16x128xbf16, #tpu.memory_space<vmem>>, vector<16x128xbf16>
    %c0_1 = arith.constant 0 : index
    %c0_2 = arith.constant 0 : index
    %1 = vector.load %arg4[%c0_1, %c0_2] : memref<128x256xbf16, #tpu.memory_space<vmem>>, vector<128x256xbf16>
    %cst = arith.constant dense<0.000000e+00> : vector<16x256xf32>
    %2 = tpu.matmul %0, %1, %cst {dimension_numbers = #tpu.dot_dimension_numbers<[1], [0], [0], [1], [0, 0, 1, 1], [], []>} : vector<16x128xbf16>, vector<128x256xbf16>, vector<16x256xf32> -> vector<16x256xf32>
    %c0_3 = arith.constant 0 : index
    %c0_4 = arith.constant 0 : index
    %3 = vector.load %arg5[%c0_3, %c0_4] : memref<1x256xf32, #tpu.memory_space<vmem>>, vector<1x256xf32>
    %c0_5 = arith.constant 0 : index
    %c0_6 = arith.constant 0 : index
    %4 = vector.load %arg6[%c0_5, %c0_6] : memref<1x256xf32, #tpu.memory_space<vmem>>, vector<1x256xf32>
    %cst_7 = arith.constant dense<0.000000e+00> : vector<16xf32>
    %5 = vector.multi_reduction <add>, %2, %cst_7 [1] : vector<16x256xf32> to vector<16xf32>
    %6 = vector.shape_cast %5 : vector<16xf32> to vector<16x1xf32>
    %cst_8 = arith.constant 2.560000e+02 : f32
    %7 = vector.broadcast %cst_8 : f32 to vector<16x1xf32>
    %8 = arith.divf %6, %7 : vector<16x1xf32>
    %9 = vector.broadcast %8 : vector<16x1xf32> to vector<16x256xf32>
    %10 = arith.subf %2, %9 : vector<16x256xf32>
    %11 = arith.mulf %10, %10 : vector<16x256xf32>
    %cst_9 = arith.constant dense<0.000000e+00> : vector<16xf32>
    %12 = vector.multi_reduction <add>, %11, %cst_9 [1] : vector<16x256xf32> to vector<16xf32>
    %13 = vector.shape_cast %12 : vector<16xf32> to vector<16x1xf32>
    %cst_10 = arith.constant 2.560000e+02 : f32
    %14 = vector.broadcast %cst_10 : f32 to vector<16x1xf32>
    %15 = arith.divf %13, %14 : vector<16x1xf32>
    %cst_11 = arith.constant 9.99999997E-7 : f32
    %16 = vector.broadcast %cst_11 : f32 to vector<16x1xf32>
    %17 = arith.addf %15, %16 : vector<16x1xf32>
    %18 = math.rsqrt %17 : vector<16x1xf32>
    %19 = vector.broadcast %18 : vector<16x1xf32> to vector<16x256xf32>
    %20 = arith.mulf %10, %19 : vector<16x256xf32>
    %21 = vector.broadcast %3 : vector<1x256xf32> to vector<16x256xf32>
    %22 = arith.mulf %20, %21 : vector<16x256xf32>
    %23 = vector.broadcast %4 : vector<1x256xf32> to vector<16x256xf32>
    %24 = arith.addf %22, %23 : vector<16x256xf32>
    %25 = arith.truncf %24 : vector<16x256xf32> to vector<16x256xbf16>
    %c0_12 = arith.constant 0 : index
    %c0_13 = arith.constant 0 : index
    %26 = vector.load %arg7[%c0_12, %c0_13] : memref<256x512xbf16, #tpu.memory_space<vmem>>, vector<256x512xbf16>
    %cst_14 = arith.constant dense<0.000000e+00> : vector<16x512xf32>
    %27 = tpu.matmul %25, %26, %cst_14 {dimension_numbers = #tpu.dot_dimension_numbers<[1], [0], [0], [1], [0, 0, 1, 1], [], []>} : vector<16x256xbf16>, vector<256x512xbf16>, vector<16x512xf32> -> vector<16x512xf32>
    %c0_15 = arith.constant 0 : index
    %c0_16 = arith.constant 0 : index
    %28 = vector.load %arg8[%c0_15, %c0_16] : memref<1x512xf32, #tpu.memory_space<vmem>>, vector<1x512xf32>
    %29 = vector.broadcast %28 : vector<1x512xf32> to vector<16x512xf32>
    %30 = arith.addf %27, %29 : vector<16x512xf32>
    %31 = vector.extract_strided_slice %30 {offsets = [0, 0], sizes = [16, 256], strides = [1, 1]} : vector<16x512xf32> to vector<16x256xf32>
    %c0_17 = arith.constant 0 : index
    %c0_18 = arith.constant 0 : index
    %32 = vector.load %arg2[%c0_17, %c0_18] : memref<16x256xf32, #tpu.memory_space<vmem>>, vector<16x256xf32>
    %33 = arith.addf %31, %32 : vector<16x256xf32>
    %34 = arith.truncf %33 : vector<16x256xf32> to vector<16x256xbf16>
    %35 = vector.extract_strided_slice %30 {offsets = [0, 256], sizes = [16, 256], strides = [1, 1]} : vector<16x512xf32> to vector<16x256xf32>
    %36 = arith.truncf %35 : vector<16x256xf32> to vector<16x256xbf16>
    %c0_19 = arith.constant 0 : index
    %c0_20 = arith.constant 0 : index
    %37 = vector.load %arg3[%c0_19, %c0_20] : memref<16x256xbf16, #tpu.memory_space<vmem>>, vector<16x256xbf16>
    %38 = vector.extract_strided_slice %37 {offsets = [0, 0], sizes = [16, 128], strides = [1, 1]} : vector<16x256xbf16> to vector<16x128xbf16>
    %39 = vector.extract_strided_slice %34 {offsets = [0, 0], sizes = [16, 128], strides = [1, 1]} : vector<16x256xbf16> to vector<16x128xbf16>
    %40 = vector.extract_strided_slice %36 {offsets = [0, 0], sizes = [16, 128], strides = [1, 1]} : vector<16x256xbf16> to vector<16x128xbf16>
    %cst_21 = arith.constant dense<0.000000e+00> : vector<16x16xf32>
    %41 = tpu.matmul %38, %39, %cst_21 {dimension_numbers = #tpu.dot_dimension_numbers<[1], [1], [0], [0], [0, 0, 1, 0], [], []>} : vector<16x128xbf16>, vector<16x128xbf16>, vector<16x16xf32> -> vector<16x16xf32>
    %cst_22 = arith.constant dense<0xFF800000> : vector<16xf32>
    %42 = vector.multi_reduction <maximumf>, %41, %cst_22 [1] : vector<16x16xf32> to vector<16xf32>
    %43 = vector.shape_cast %42 : vector<16xf32> to vector<16x1xf32>
    %44 = vector.broadcast %43 : vector<16x1xf32> to vector<16x16xf32>
    %45 = arith.subf %41, %44 : vector<16x16xf32>
    %46 = math.exp %45 : vector<16x16xf32>
    %cst_23 = arith.constant dense<0.000000e+00> : vector<16xf32>
    %47 = vector.multi_reduction <add>, %46, %cst_23 [1] : vector<16x16xf32> to vector<16xf32>
    %48 = vector.shape_cast %47 : vector<16xf32> to vector<16x1xf32>
    %49 = tpu.reciprocal %48 {approx = true} : vector<16x1xf32> -> vector<16x1xf32>
    %50 = vector.broadcast %49 : vector<16x1xf32> to vector<16x16xf32>
    %51 = arith.mulf %46, %50 : vector<16x16xf32>
    %52 = arith.truncf %51 : vector<16x16xf32> to vector<16x16xbf16>
    %cst_24 = arith.constant dense<0.000000e+00> : vector<16x128xf32>
    %53 = tpu.matmul %52, %40, %cst_24 {dimension_numbers = #tpu.dot_dimension_numbers<[1], [0], [0], [1], [0, 0, 1, 1], [], []>} : vector<16x16xbf16>, vector<16x128xbf16>, vector<16x128xf32> -> vector<16x128xf32>
    %c0_25 = arith.constant 0 : index
    %c0_26 = arith.constant 0 : index
    %54 = vector.load %arg15[%c0_25, %c0_26] : memref<16x256xf32, #tpu.memory_space<vmem>>, vector<16x128xf32>
    tpu.vector_store %arg15[%c0_25, %c0_26], %53 {strides = array<i32>} : memref<16x256xf32, #tpu.memory_space<vmem>>, vector<16x128xf32>,
    %55 = vector.extract_strided_slice %37 {offsets = [0, 128], sizes = [16, 128], strides = [1, 1]} : vector<16x256xbf16> to vector<16x128xbf16>
    %56 = vector.extract_strided_slice %34 {offsets = [0, 128], sizes = [16, 128], strides = [1, 1]} : vector<16x256xbf16> to vector<16x128xbf16>
    %57 = vector.extract_strided_slice %36 {offsets = [0, 128], sizes = [16, 128], strides = [1, 1]} : vector<16x256xbf16> to vector<16x128xbf16>
    %cst_27 = arith.constant dense<0.000000e+00> : vector<16x16xf32>
    %58 = tpu.matmul %55, %56, %cst_27 {dimension_numbers = #tpu.dot_dimension_numbers<[1], [1], [0], [0], [0, 0, 1, 0], [], []>} : vector<16x128xbf16>, vector<16x128xbf16>, vector<16x16xf32> -> vector<16x16xf32>
    %cst_28 = arith.constant dense<0xFF800000> : vector<16xf32>
    %59 = vector.multi_reduction <maximumf>, %58, %cst_28 [1] : vector<16x16xf32> to vector<16xf32>
    %60 = vector.shape_cast %59 : vector<16xf32> to vector<16x1xf32>
    %61 = vector.broadcast %60 : vector<16x1xf32> to vector<16x16xf32>
    %62 = arith.subf %58, %61 : vector<16x16xf32>
    %63 = math.exp %62 : vector<16x16xf32>
    %cst_29 = arith.constant dense<0.000000e+00> : vector<16xf32>
    %64 = vector.multi_reduction <add>, %63, %cst_29 [1] : vector<16x16xf32> to vector<16xf32>
    %65 = vector.shape_cast %64 : vector<16xf32> to vector<16x1xf32>
    %66 = tpu.reciprocal %65 {approx = true} : vector<16x1xf32> -> vector<16x1xf32>
    %67 = vector.broadcast %66 : vector<16x1xf32> to vector<16x16xf32>
    %68 = arith.mulf %63, %67 : vector<16x16xf32>
    %69 = arith.truncf %68 : vector<16x16xf32> to vector<16x16xbf16>
    %cst_30 = arith.constant dense<0.000000e+00> : vector<16x128xf32>
    %70 = tpu.matmul %69, %57, %cst_30 {dimension_numbers = #tpu.dot_dimension_numbers<[1], [0], [0], [1], [0, 0, 1, 1], [], []>} : vector<16x16xbf16>, vector<16x128xbf16>, vector<16x128xf32> -> vector<16x128xf32>
    %c0_31 = arith.constant 0 : index
    %c128 = arith.constant 128 : index
    %71 = vector.load %arg15[%c0_31, %c128] : memref<16x256xf32, #tpu.memory_space<vmem>>, vector<16x128xf32>
    tpu.vector_store %arg15[%c0_31, %c128], %70 {strides = array<i32>} : memref<16x256xf32, #tpu.memory_space<vmem>>, vector<16x128xf32>,
    %c0_32 = arith.constant 0 : index
    %c0_33 = arith.constant 0 : index
    %72 = vector.load %arg15[%c0_32, %c0_33] : memref<16x256xf32, #tpu.memory_space<vmem>>, vector<16x256xf32>
    %73 = arith.truncf %72 : vector<16x256xf32> to vector<16x256xbf16>
    %c0_34 = arith.constant 0 : index
    %c0_35 = arith.constant 0 : index
    %74 = vector.load %arg9[%c0_34, %c0_35] : memref<256x256xbf16, #tpu.memory_space<vmem>>, vector<256x256xbf16>
    %cst_36 = arith.constant dense<0.000000e+00> : vector<16x256xf32>
    %75 = tpu.matmul %73, %74, %cst_36 {dimension_numbers = #tpu.dot_dimension_numbers<[1], [0], [0], [1], [0, 0, 1, 1], [], []>} : vector<16x256xbf16>, vector<256x256xbf16>, vector<16x256xf32> -> vector<16x256xf32>
    %c0_37 = arith.constant 0 : index
    %c0_38 = arith.constant 0 : index
    %76 = vector.load %arg10[%c0_37, %c0_38] : memref<1x256xf32, #tpu.memory_space<vmem>>, vector<1x256xf32>
    %77 = vector.broadcast %76 : vector<1x256xf32> to vector<16x256xf32>
    %78 = arith.addf %75, %77 : vector<16x256xf32>
    %c0_39 = arith.constant 0 : index
    %c0_40 = arith.constant 0 : index
    %79 = vector.load %arg11[%c0_39, %c0_40] : memref<1x256xf32, #tpu.memory_space<vmem>>, vector<1x256xf32>
    %c0_41 = arith.constant 0 : index
    %c0_42 = arith.constant 0 : index
    %80 = vector.load %arg12[%c0_41, %c0_42] : memref<1x256xf32, #tpu.memory_space<vmem>>, vector<1x256xf32>
    %cst_43 = arith.constant dense<0.000000e+00> : vector<16xf32>
    %81 = vector.multi_reduction <add>, %78, %cst_43 [1] : vector<16x256xf32> to vector<16xf32>
    %82 = vector.shape_cast %81 : vector<16xf32> to vector<16x1xf32>
    %cst_44 = arith.constant 2.560000e+02 : f32
    %83 = vector.broadcast %cst_44 : f32 to vector<16x1xf32>
    %84 = arith.divf %82, %83 : vector<16x1xf32>
    %85 = vector.broadcast %84 : vector<16x1xf32> to vector<16x256xf32>
    %86 = arith.subf %78, %85 : vector<16x256xf32>
    %87 = arith.mulf %86, %86 : vector<16x256xf32>
    %cst_45 = arith.constant dense<0.000000e+00> : vector<16xf32>
    %88 = vector.multi_reduction <add>, %87, %cst_45 [1] : vector<16x256xf32> to vector<16xf32>
    %89 = vector.shape_cast %88 : vector<16xf32> to vector<16x1xf32>
    %cst_46 = arith.constant 2.560000e+02 : f32
    %90 = vector.broadcast %cst_46 : f32 to vector<16x1xf32>
    %91 = arith.divf %89, %90 : vector<16x1xf32>
    %cst_47 = arith.constant 9.99999997E-7 : f32
    %92 = vector.broadcast %cst_47 : f32 to vector<16x1xf32>
    %93 = arith.addf %91, %92 : vector<16x1xf32>
    %94 = math.rsqrt %93 : vector<16x1xf32>
    %95 = vector.broadcast %94 : vector<16x1xf32> to vector<16x256xf32>
    %96 = arith.mulf %86, %95 : vector<16x256xf32>
    %97 = vector.broadcast %79 : vector<1x256xf32> to vector<16x256xf32>
    %98 = arith.mulf %96, %97 : vector<16x256xf32>
    %99 = vector.broadcast %80 : vector<1x256xf32> to vector<16x256xf32>
    %100 = arith.addf %98, %99 : vector<16x256xf32>
    %101 = arith.truncf %100 : vector<16x256xf32> to vector<16x256xbf16>
    %c0_48 = arith.constant 0 : index
    %c0_49 = arith.constant 0 : index
    %102 = vector.load %arg13[%c0_48, %c0_49] : memref<256x256xbf16, #tpu.memory_space<vmem>>, vector<256x256xbf16>
    %cst_50 = arith.constant dense<0.000000e+00> : vector<16x256xf32>
    %103 = tpu.matmul %101, %102, %cst_50 {dimension_numbers = #tpu.dot_dimension_numbers<[1], [0], [0], [1], [0, 0, 1, 1], [], []>} : vector<16x256xbf16>, vector<256x256xbf16>, vector<16x256xf32> -> vector<16x256xf32>
    %104 = arith.truncf %103 : vector<16x256xf32> to vector<16x256xbf16>
    %c0_51 = arith.constant 0 : index
    %c0_52 = arith.constant 0 : index
    %105 = vector.load %arg14[%c0_51, %c0_52] : memref<16x256xbf16, #tpu.memory_space<vmem>>, vector<16x256xbf16>
    tpu.vector_store %arg14[%c0_51, %c0_52], %104 {strides = array<i32>} : memref<16x256xbf16, #tpu.memory_space<vmem>>, vector<16x256xbf16>,
    return
  }
  func.func @transform_0(%arg0: i32) -> (i32, i32) {
    %c0_i32 = arith.constant 0 : i32
    %c0_i32_0 = arith.constant 0 : i32
    return %arg0, %c0_i32 : i32, i32
  }
  func.func @transform_1(%arg0: i32) -> (i32, i32) {
    %c0_i32 = arith.constant 0 : i32
    %c0_i32_0 = arith.constant 0 : i32
    %c0_i32_1 = arith.constant 0 : i32
    return %c0_i32, %c0_i32_0 : i32, i32
  }
  func.func @transform_2(%arg0: i32) -> (i32, i32) {
    %c0_i32 = arith.constant 0 : i32
    %c0_i32_0 = arith.constant 0 : i32
    %c0_i32_1 = arith.constant 0 : i32
    return %c0_i32, %c0_i32_0 : i32, i32
  }
  func.func @transform_3(%arg0: i32) -> (i32, i32) {
    %c0_i32 = arith.constant 0 : i32
    %c0_i32_0 = arith.constant 0 : i32
    %c0_i32_1 = arith.constant 0 : i32
    return %c0_i32, %c0_i32_0 : i32, i32
  }
  func.func @transform_4(%arg0: i32) -> (i32, i32) {
    %c0_i32 = arith.constant 0 : i32
    %c0_i32_0 = arith.constant 0 : i32
    %c0_i32_1 = arith.constant 0 : i32
    return %c0_i32, %c0_i32_0 : i32, i32
  }
  func.func @transform_5(%arg0: i32) -> (i32, i32) {
    %c0_i32 = arith.constant 0 : i32
    %c0_i32_0 = arith.constant 0 : i32
    %c0_i32_1 = arith.constant 0 : i32
    return %c0_i32, %c0_i32_0 : i32, i32
  }
  func.func @transform_6(%arg0: i32) -> (i32, i32) {
    %c0_i32 = arith.constant 0 : i32
    %c0_i32_0 = arith.constant 0 : i32
    %c0_i32_1 = arith.constant 0 : i32
    return %c0_i32, %c0_i32_0 : i32, i32
  }
  func.func @transform_7(%arg0: i32) -> (i32, i32) {
    %c0_i32 = arith.constant 0 : i32
    %c0_i32_0 = arith.constant 0 : i32
    %c0_i32_1 = arith.constant 0 : i32
    return %c0_i32, %c0_i32_0 : i32, i32
  }
  func.func @transform_8(%arg0: i32) -> (i32, i32) {
    %c0_i32 = arith.constant 0 : i32
    %c0_i32_0 = arith.constant 0 : i32
    %c0_i32_1 = arith.constant 0 : i32
    return %c0_i32, %c0_i32_0 : i32, i32
  }
  func.func @transform_9(%arg0: i32) -> (i32, i32) {
    %c0_i32 = arith.constant 0 : i32
    %c0_i32_0 = arith.constant 0 : i32
    %c0_i32_1 = arith.constant 0 : i32
    return %c0_i32, %c0_i32_0 : i32, i32
  }
  func.func @transform_10(%arg0: i32) -> (i32, i32) {
    %c0_i32 = arith.constant 0 : i32
    %c0_i32_0 = arith.constant 0 : i32
    %c0_i32_1 = arith.constant 0 : i32
    return %c0_i32, %c0_i32_0 : i32, i32
  }
  func.func @transform_11(%arg0: i32) -> (i32, i32) {
    %c0_i32 = arith.constant 0 : i32
    %c0_i32_0 = arith.constant 0 : i32
    %c0_i32_1 = arith.constant 0 : i32
    return %c0_i32, %c0_i32_0 : i32, i32
  }
  func.func @transform_12(%arg0: i32) -> (i32, i32) {
    %c0_i32 = arith.constant 0 : i32
    %c0_i32_0 = arith.constant 0 : i32
    %c0_i32_1 = arith.constant 0 : i32
    return %c0_i32, %c0_i32_0 : i32, i32
  }
  func.func @transform_13(%arg0: i32) -> (i32, i32) {
    %c0_i32 = arith.constant 0 : i32
    %c0_i32_0 = arith.constant 0 : i32
    return %arg0, %c0_i32 : i32, i32
  }
}

</mosaic_0001>

<llo_original>
// kernel: tpu_custom_call.1
$region0: #{tpu_custom_call.1}
  #allocation0 [shape = 'u32[]', space=smem, size = 0x4, offset = 0x4, fixed_abs, tag = 'smem constant byte address 0x4 - core index']
  #allocation1 [shape = 'u32[144,128]{1,0:T(1,128)}', space=vmem, size = 0x12000, scoped, tag = 'internal scratch']
  #allocation2 [shape = 'f32[16,256]{1,0:T(8,128)}', space=vmem, size = 0x4000, scoped, tag = 'scratch operand']
  %s0 = inlined_call_operand.hbm [shape: bf16[32,128], index: 0, kind: input, shape index: {}]
  %s1 = inlined_call_operand.hbm [shape: f32[16,256], index: 1, kind: input, shape index: {}]
  %s2 = inlined_call_operand.hbm [shape: bf16[16,256], index: 2, kind: input, shape index: {}]
  %s3 = inlined_call_operand.hbm [shape: bf16[128,256], index: 3, kind: input, shape index: {}]
  %s4 = inlined_call_operand.vmem [shape: f32[1,256], index: 4, kind: input, shape index: {}]
  %s5 = inlined_call_operand.vmem [shape: f32[1,256], index: 5, kind: input, shape index: {}]
  %s6 = inlined_call_operand.hbm [shape: bf16[256,512], index: 6, kind: input, shape index: {}]
  %s7 = inlined_call_operand.vmem [shape: f32[1,512], index: 7, kind: input, shape index: {}]
  %s8 = inlined_call_operand.hbm [shape: bf16[256,256], index: 8, kind: input, shape index: {}]
  %s9 = inlined_call_operand.vmem [shape: f32[1,256], index: 9, kind: input, shape index: {}]
  %s10 = inlined_call_operand.vmem [shape: f32[1,256], index: 10, kind: input, shape index: {}]
  %s11 = inlined_call_operand.vmem [shape: f32[1,256], index: 11, kind: input, shape index: {}]
  %s12 = inlined_call_operand.hbm [shape: bf16[256,256], index: 12, kind: input, shape index: {}]
  %s13 = inlined_call_operand.hbm [shape: bf16[32,256], index: 13, kind: output, shape index: {}]
  %s14 = sld [smem:[#allocation0]]
  $region113: #{tpu_custom_call.1} parent=0
    _
  %s16 = ssub.s32 1, %s14
  %s17 = scalar_select 0, %s16, %s14
  $region1: #{tpu_custom_call.1} parent=0
    #allocation3 [shape = 'u8[8192]{0}', space=vmem, size = 0x2000, scoped, tag = 'input window, operand 0']
    #allocation4 [shape = 's32[2]{0}', space=sflag, size = 0x8, scoped, tag = 'scoped memory for tpu_custom_call.1']
    #allocation5 [shape = 's32[2]{0}', space=sflag, size = 0x8, scoped, tag = 'scoped memory for tpu_custom_call.1']
    #allocation6 [shape = 'u8[16384]{0}', space=vmem, size = 0x4000, scoped, tag = 'input window, operand 1, single buffered']
    #allocation7 [shape = 's32[1]{0}', space=sflag, size = 0x4, scoped, tag = 'scoped memory for tpu_custom_call.1']
    #allocation8 [shape = 'u8[8192]{0}', space=vmem, size = 0x2000, scoped, tag = 'input window, operand 2, single buffered']
    #allocation9 [shape = 'u8[65536]{0}', space=vmem, size = 0x10000, scoped, tag = 'input window, operand 3, single buffered']
    #allocation10 [shape = 's32[1]{0}', space=sflag, size = 0x4, scoped, tag = 'scoped memory for tpu_custom_call.1']
    #allocation11 [shape = 'u8[262144]{0}', space=vmem, size = 0x40000, scoped, tag = 'input window, operand 6, single buffered']
    #allocation12 [shape = 'u8[131072]{0}', space=vmem, size = 0x20000, scoped, tag = 'input window, operand 8, single buffered']
    #allocation13 [shape = 's32[1]{0}', space=sflag, size = 0x4, scoped, tag = 'scoped memory for tpu_custom_call.1']
    #allocation14 [shape = 'u8[131072]{0}', space=vmem, size = 0x20000, scoped, tag = 'input window, operand 12, single buffered']
    #allocation15 [shape = 'u8[16384]{0}', space=vmem, size = 0x4000, scoped, tag = 'output window, operand 0']
    %18 = vsyncpa [#allocation4], 0
    %s19 = scalar_lea.sflag [#allocation4], 1
    %20 = vsyncpa %s19, 0
    %21 = vsyncpa [#allocation7], 0
    %22 = vsyncpa [#allocation10], 0
    %23 = vsyncpa [#allocation13], 0
    %24 = vsyncpa [#allocation5], 0
    %s25 = scalar_lea.sflag [#allocation5], 1
    %26 = vsyncpa %s25, 0
    loop: start=0, step=1, limit=4
    $region2: #{tpu_custom_call.1} parent=1 // loop_pre_header
      _
    $region3: #{tpu_custom_call.1} parent=1 // loop_header
      %s28 = sphi 0, %s32
      %p29 = scmp.ge.s32.totalorder %s28, 4
      %s38 = sphi 0, %s40
      %s41 = sphi 0, %s38
      %s42 = sphi 0, %s41
      %s58 = sphi 0, %s42
      %s62 = sphi 0, %s62
      %s64 = sphi 0, %s62
      %s65 = sphi 0, %s64
      %s79 = sphi 0, %s65
      %s83 = sphi 0, %s83
      %s85 = sphi 0, %s83
      %s86 = sphi 0, %s85
      %s100 = sphi 0, %s86
      %s104 = sphi 0, %s104
      %s106 = sphi 0, %s104
      %s107 = sphi 0, %s106
      %s121 = sphi 0, %s107
      %s125 = sphi 0, %s125
      %s127 = sphi 0, %s125
      %s128 = sphi 0, %s127
      %s142 = sphi 0, %s128
      %s146 = sphi 0, %s146
      %s148 = sphi 0, %s146
      %s149 = sphi 0, %s148
      %s163 = sphi 0, %s149
      %s167 = sphi 0, %s167
      %s169 = sphi 0, %s167
      %s170 = sphi 0, %s169
      %s184 = sphi 0, %s170
      %s188 = sphi 0, %s188
      %s190 = sphi 0, %s188
      %s191 = sphi 0, %s190
      %s205 = sphi 0, %s191
      %s209 = sphi 0, %s209
      %s211 = sphi 0, %s209
      %s212 = sphi 0, %s211
      %s226 = sphi 0, %s212
      %s230 = sphi 0, %s230
      %s232 = sphi 0, %s230
      %s233 = sphi 0, %s232
      %s247 = sphi 0, %s233
      %s251 = sphi 0, %s251
      %s253 = sphi 0, %s251
      %s254 = sphi 0, %s253
      %s268 = sphi 0, %s254
      %s272 = sphi 0, %s272
      %s274 = sphi 0, %s272
      %s275 = sphi 0, %s274
      %s289 = sphi 0, %s275
      %s293 = sphi 0, %s293
      %s295 = sphi 0, %s293
      %s296 = sphi 0, %s295
      %s310 = sphi 0, %s296
      %s316 = sphi 0, %s318
      %s319 = sphi 0, %s316
      %s320 = sphi 0, %s319
      %s336 = sphi 0, %s320
    $region4: #{tpu_custom_call.1} parent=1 // loop_header_branch
      %31 = sbr.rel (%p29) target = $region8
    $region5: #{tpu_custom_call.1} parent=1 // loop_body
      %s33 = ssub.s32 %s28, 1
      %s34 = ssub.s32 %s28, 2
      %s35 = sadd.s32 %s28, 1
      %s36 = ssub.s32 %s28, %s35
      %p37 = scmp.eq.s32.totalorder %s36, 0
      %s39 = sadd.s32 %s38, 1
      %s40 = scalar_select %p37, %s38, %s39
      %p43 = pneg %p37
      %p44 = scmp.eq.s32.totalorder %s28, 1
      %p45 = por %p43, %p44
      %p46 = scmp.ne.s32.totalorder %s38, %s41
      %p47 = scmp.eq.s32.totalorder %s28, 0
      %p48 = por %p46, %p47
      %p49 = scmp.ne.s32.totalorder %s38, %s41
      %p50 = scmp.eq.s32.totalorder %s33, 1
      %p51 = por %p49, %p50
      %p52 = scmp.ne.s32.totalorder %s41, %s42
      %p53 = scmp.eq.s32.totalorder %s33, 0
      %p54 = por %p52, %p53
      %p55 = scmp.ne.s32.totalorder %s41, %s42
      %p56 = scmp.eq.s32.totalorder %s34, 1
      %p57 = por %p55, %p56
      %p59 = scmp.ne.s32.totalorder %s42, %s58
      %p60 = scmp.eq.s32.totalorder %s34, 0
      %p61 = por %p59, %p60
      %s63 = sadd.s32 %s62, 1
      %p66 = scmp.eq.s32.totalorder %s28, 1
      %p67 = scmp.ne.s32.totalorder %s62, %s64
      %p68 = scmp.eq.s32.totalorder %s28, 0
      %p69 = por %p67, %p68
      %p70 = scmp.ne.s32.totalorder %s62, %s64
      %p71 = scmp.eq.s32.totalorder %s33, 1
      %p72 = por %p70, %p71
      %p73 = scmp.ne.s32.totalorder %s64, %s65
      %p74 = scmp.eq.s32.totalorder %s33, 0
      %p75 = por %p73, %p74
      %p76 = scmp.ne.s32.totalorder %s64, %s65
      %p77 = scmp.eq.s32.totalorder %s34, 1
      %p78 = por %p76, %p77
      %p80 = scmp.ne.s32.totalorder %s65, %s79
      %p81 = scmp.eq.s32.totalorder %s34, 0
      %p82 = por %p80, %p81
      %s84 = sadd.s32 %s83, 1
      %p87 = scmp.eq.s32.totalorder %s28, 1
      %p88 = scmp.ne.s32.totalorder %s83, %s85
      %p89 = scmp.eq.s32.totalorder %s28, 0
      %p90 = por %p88, %p89
      %p91 = scmp.ne.s32.totalorder %s83, %s85
      %p92 = scmp.eq.s32.totalorder %s33, 1
      %p93 = por %p91, %p92
      %p94 = scmp.ne.s32.totalorder %s85, %s86
      %p95 = scmp.eq.s32.totalorder %s33, 0
      %p96 = por %p94, %p95
      %p97 = scmp.ne.s32.totalorder %s85, %s86
      %p98 = scmp.eq.s32.totalorder %s34, 1
      %p99 = por %p97, %p98
      %p101 = scmp.ne.s32.totalorder %s86, %s100
      %p102 = scmp.eq.s32.totalorder %s34, 0
      %p103 = por %p101, %p102
      %s105 = sadd.s32 %s104, 1
      %p108 = scmp.eq.s32.totalorder %s28, 1
      %p109 = scmp.ne.s32.totalorder %s104, %s106
      %p110 = scmp.eq.s32.totalorder %s28, 0
      %p111 = por %p109, %p110
      %p112 = scmp.ne.s32.totalorder %s104, %s106
      %p113 = scmp.eq.s32.totalorder %s33, 1
      %p114 = por %p112, %p113
      %p115 = scmp.ne.s32.totalorder %s106, %s107
      %p116 = scmp.eq.s32.totalorder %s33, 0
      %p117 = por %p115, %p116
      %p118 = scmp.ne.s32.totalorder %s106, %s107
      %p119 = scmp.eq.s32.totalorder %s34, 1
      %p120 = por %p118, %p119
      %p122 = scmp.ne.s32.totalorder %s107, %s121
      %p123 = scmp.eq.s32.totalorder %s34, 0
      %p124 = por %p122, %p123
      %s126 = sadd.s32 %s125, 1
      %p129 = scmp.eq.s32.totalorder %s28, 1
      %p130 = scmp.ne.s32.totalorder %s125, %s127
      %p131 = scmp.eq.s32.totalorder %s28, 0
      %p132 = por %p130, %p131
      %p133 = scmp.ne.s32.totalorder %s125, %s127
      %p134 = scmp.eq.s32.totalorder %s33, 1
      %p135 = por %p133, %p134
      %p136 = scmp.ne.s32.totalorder %s127, %s128
      %p137 = scmp.eq.s32.totalorder %s33, 0
      %p138 = por %p136, %p137
      %p139 = scmp.ne.s32.totalorder %s127, %s128
      %p140 = scmp.eq.s32.totalorder %s34, 1
      %p141 = por %p139, %p140
      %p143 = scmp.ne.s32.totalorder %s128, %s142
      %p144 = scmp.eq.s32.totalorder %s34, 0
      %p145 = por %p143, %p144
      %s147 = sadd.s32 %s146, 1
      %p150 = scmp.eq.s32.totalorder %s28, 1
      %p151 = scmp.ne.s32.totalorder %s146, %s148
      %p152 = scmp.eq.s32.totalorder %s28, 0
      %p153 = por %p151, %p152
      %p154 = scmp.ne.s32.totalorder %s146, %s148
      %p155 = scmp.eq.s32.totalorder %s33, 1
      %p156 = por %p154, %p155
      %p157 = scmp.ne.s32.totalorder %s148, %s149
      %p158 = scmp.eq.s32.totalorder %s33, 0
      %p159 = por %p157, %p158
      %p160 = scmp.ne.s32.totalorder %s148, %s149
      %p161 = scmp.eq.s32.totalorder %s34, 1
      %p162 = por %p160, %p161
      %p164 = scmp.ne.s32.totalorder %s149, %s163
      %p165 = scmp.eq.s32.totalorder %s34, 0
      %p166 = por %p164, %p165
      %s168 = sadd.s32 %s167, 1
      %p171 = scmp.eq.s32.totalorder %s28, 1
      %p172 = scmp.ne.s32.totalorder %s167, %s169
      %p173 = scmp.eq.s32.totalorder %s28, 0
      %p174 = por %p172, %p173
      %p175 = scmp.ne.s32.totalorder %s167, %s169
      %p176 = scmp.eq.s32.totalorder %s33, 1
      %p177 = por %p175, %p176
      %p178 = scmp.ne.s32.totalorder %s169, %s170
      %p179 = scmp.eq.s32.totalorder %s33, 0
      %p180 = por %p178, %p179
      %p181 = scmp.ne.s32.totalorder %s169, %s170
      %p182 = scmp.eq.s32.totalorder %s34, 1
      %p183 = por %p181, %p182
      %p185 = scmp.ne.s32.totalorder %s170, %s184
      %p186 = scmp.eq.s32.totalorder %s34, 0
      %p187 = por %p185, %p186
      %s189 = sadd.s32 %s188, 1
      %p192 = scmp.eq.s32.totalorder %s28, 1
      %p193 = scmp.ne.s32.totalorder %s188, %s190
      %p194 = scmp.eq.s32.totalorder %s28, 0
      %p195 = por %p193, %p194
      %p196 = scmp.ne.s32.totalorder %s188, %s190
      %p197 = scmp.eq.s32.totalorder %s33, 1
      %p198 = por %p196, %p197
      %p199 = scmp.ne.s32.totalorder %s190, %s191
      %p200 = scmp.eq.s32.totalorder %s33, 0
      %p201 = por %p199, %p200
      %p202 = scmp.ne.s32.totalorder %s190, %s191
      %p203 = scmp.eq.s32.totalorder %s34, 1
      %p204 = por %p202, %p203
      %p206 = scmp.ne.s32.totalorder %s191, %s205
      %p207 = scmp.eq.s32.totalorder %s34, 0
      %p208 = por %p206, %p207
      %s210 = sadd.s32 %s209, 1
      %p213 = scmp.eq.s32.totalorder %s28, 1
      %p214 = scmp.ne.s32.totalorder %s209, %s211
      %p215 = scmp.eq.s32.totalorder %s28, 0
      %p216 = por %p214, %p215
      %p217 = scmp.ne.s32.totalorder %s209, %s211
      %p218 = scmp.eq.s32.totalorder %s33, 1
      %p219 = por %p217, %p218
      %p220 = scmp.ne.s32.totalorder %s211, %s212
      %p221 = scmp.eq.s32.totalorder %s33, 0
      %p222 = por %p220, %p221
      %p223 = scmp.ne.s32.totalorder %s211, %s212
      %p224 = scmp.eq.s32.totalorder %s34, 1
      %p225 = por %p223, %p224
      %p227 = scmp.ne.s32.totalorder %s212, %s226
      %p228 = scmp.eq.s32.totalorder %s34, 0
      %p229 = por %p227, %p228
      %s231 = sadd.s32 %s230, 1
      %p234 = scmp.eq.s32.totalorder %s28, 1
      %p235 = scmp.ne.s32.totalorder %s230, %s232
      %p236 = scmp.eq.s32.totalorder %s28, 0
      %p237 = por %p235, %p236
      %p238 = scmp.ne.s32.totalorder %s230, %s232
      %p239 = scmp.eq.s32.totalorder %s33, 1
      %p240 = por %p238, %p239
      %p241 = scmp.ne.s32.totalorder %s232, %s233
      %p242 = scmp.eq.s32.totalorder %s33, 0
      %p243 = por %p241, %p242
      %p244 = scmp.ne.s32.totalorder %s232, %s233
      %p245 = scmp.eq.s32.totalorder %s34, 1
      %p246 = por %p244, %p245
      %p248 = scmp.ne.s32.totalorder %s233, %s247
      %p249 = scmp.eq.s32.totalorder %s34, 0
      %p250 = por %p248, %p249
      %s252 = sadd.s32 %s251, 1
      %p255 = scmp.eq.s32.totalorder %s28, 1
      %p256 = scmp.ne.s32.totalorder %s251, %s253
      %p257 = scmp.eq.s32.totalorder %s28, 0
      %p258 = por %p256, %p257
      %p259 = scmp.ne.s32.totalorder %s251, %s253
      %p260 = scmp.eq.s32.totalorder %s33, 1
      %p261 = por %p259, %p260
      %p262 = scmp.ne.s32.totalorder %s253, %s254
      %p263 = scmp.eq.s32.totalorder %s33, 0
      %p264 = por %p262, %p263
      %p265 = scmp.ne.s32.totalorder %s253, %s254
      %p266 = scmp.eq.s32.totalorder %s34, 1
      %p267 = por %p265, %p266
      %p269 = scmp.ne.s32.totalorder %s254, %s268
      %p270 = scmp.eq.s32.totalorder %s34, 0
      %p271 = por %p269, %p270
      %s273 = sadd.s32 %s272, 1
      %p276 = scmp.eq.s32.totalorder %s28, 1
      %p277 = scmp.ne.s32.totalorder %s272, %s274
      %p278 = scmp.eq.s32.totalorder %s28, 0
      %p279 = por %p277, %p278
      %p280 = scmp.ne.s32.totalorder %s272, %s274
      %p281 = scmp.eq.s32.totalorder %s33, 1
      %p282 = por %p280, %p281
      %p283 = scmp.ne.s32.totalorder %s274, %s275
      %p284 = scmp.eq.s32.totalorder %s33, 0
      %p285 = por %p283, %p284
      %p286 = scmp.ne.s32.totalorder %s274, %s275
      %p287 = scmp.eq.s32.totalorder %s34, 1
      %p288 = por %p286, %p287
      %p290 = scmp.ne.s32.totalorder %s275, %s289
      %p291 = scmp.eq.s32.totalorder %s34, 0
      %p292 = por %p290, %p291
      %s294 = sadd.s32 %s293, 1
      %p297 = scmp.eq.s32.totalorder %s28, 1
      %p298 = scmp.ne.s32.totalorder %s293, %s295
      %p299 = scmp.eq.s32.totalorder %s28, 0
      %p300 = por %p298, %p299
      %p301 = scmp.ne.s32.totalorder %s293, %s295
      %p302 = scmp.eq.s32.totalorder %s33, 1
      %p303 = por %p301, %p302
      %p304 = scmp.ne.s32.totalorder %s295, %s296
      %p305 = scmp.eq.s32.totalorder %s33, 0
      %p306 = por %p304, %p305
      %p307 = scmp.ne.s32.totalorder %s295, %s296
      %p308 = scmp.eq.s32.totalorder %s34, 1
      %p309 = por %p307, %p308
      %p311 = scmp.ne.s32.totalorder %s296, %s310
      %p312 = scmp.eq.s32.totalorder %s34, 0
      %p313 = por %p311, %p312
      %s314 = ssub.s32 %s28, %s35
      %p315 = scmp.eq.s32.totalorder %s314, 0
      %s317 = sadd.s32 %s316, 1
      %s318 = scalar_select %p315, %s316, %s317
      %p321 = pneg %p315
      %p322 = scmp.eq.s32.totalorder %s28, 1
      %p323 = por %p321, %p322
      %p324 = scmp.ne.s32.totalorder %s316, %s319
      %p325 = scmp.eq.s32.totalorder %s28, 0
      %p326 = por %p324, %p325
      %p327 = scmp.ne.s32.totalorder %s316, %s319
      %p328 = scmp.eq.s32.totalorder %s33, 1
      %p329 = por %p327, %p328
      %p330 = scmp.ne.s32.totalorder %s319, %s320
      %p331 = scmp.eq.s32.totalorder %s33, 0
      %p332 = por %p330, %p331
      %p333 = scmp.ne.s32.totalorder %s319, %s320
      %p334 = scmp.eq.s32.totalorder %s34, 1
      %p335 = por %p333, %p334
      %p337 = scmp.ne.s32.totalorder %s320, %s336
      %p338 = scmp.eq.s32.totalorder %s34, 0
      %p339 = por %p337, %p338
      %p340 = scmp.le.s32.totalorder 1, %s28
      %p341 = scmp.lt.s32.totalorder %s28, 3
      %p342 = pnand %p340, %p341
      %p343 = pneg %p342
      // Predicated region
      $region9: #{tpu_custom_call.1} parent=5 // pred_check
        _
      $region10: #{tpu_custom_call.1} parent=5 // pred_check_branch
        %345 = sbr.rel (%p342) target = $region12
      $region11: #{tpu_custom_call.1} parent=5 // pred_region
        %s346 = ssub.s32 %s28, 1
        // Predicated region
        $region13: #{tpu_custom_call.1} parent=11 // pred_check
          %p347 = pneg %p75
        $region14: #{tpu_custom_call.1} parent=11 // pred_check_branch
          %349 = sbr.rel (%p347) target = $region16
        $region15: #{tpu_custom_call.1} parent=11 // pred_region
          %s351 = ssub.s32 512, 512
          %352 = vsyncadd [#allocation7], %s351
          %s353 = sshll.u32 [#allocation6], 4
          %s354 = int_to_ptr.vmem [resolvable:$true] %s353
          %359 = dma.hbm_to_vmem [thread:$0]  %s1, 512, %s354, [#allocation7], 256, 256, 16
        $region16: #{tpu_custom_call.1} parent=11 // pred_fallthru
          _
        // Predicated region
        $region17: #{tpu_custom_call.1} parent=11 // pred_check
          %p360 = pneg %p96
        $region18: #{tpu_custom_call.1} parent=11 // pred_check_branch
          %362 = sbr.rel (%p360) target = $region20
        $region19: #{tpu_custom_call.1} parent=11 // pred_region
          %s364 = ssub.s32 256, 256
          %365 = vsyncadd [#allocation7], %s364
          %s366 = sshll.u32 [#allocation8], 4
          %s367 = int_to_ptr.vmem [resolvable:$true] %s366
          %372 = dma.hbm_to_vmem [thread:$0]  %s2, 256, %s367, [#allocation7], 128, 128, 8
        $region20: #{tpu_custom_call.1} parent=11 // pred_fallthru
          _
        // Predicated region
        $region21: #{tpu_custom_call.1} parent=11 // pred_check
          %p373 = pneg %p117
        $region22: #{tpu_custom_call.1} parent=11 // pred_check_branch
          %375 = sbr.rel (%p373) target = $region24
        $region23: #{tpu_custom_call.1} parent=11 // pred_region
          %s377 = ssub.s32 2048, 2048
          %378 = vsyncadd [#allocation10], %s377
          %s379 = sshll.u32 [#allocation9], 4
          %s380 = int_to_ptr.vmem [resolvable:$true] %s379
          %385 = dma.hbm_to_vmem [thread:$0]  %s3, 2048, %s380, [#allocation10], 128, 128, 8
        $region24: #{tpu_custom_call.1} parent=11 // pred_fallthru
          _
        // Predicated region
        $region25: #{tpu_custom_call.1} parent=11 // pred_check
          %p386 = pneg %p138
        $region26: #{tpu_custom_call.1} parent=11 // pred_check_branch
          %388 = sbr.rel (%p386) target = $region28
        $region27: #{tpu_custom_call.1} parent=11 // pred_region
          _
        $region28: #{tpu_custom_call.1} parent=11 // pred_fallthru
          _
        // Predicated region
        $region29: #{tpu_custom_call.1} parent=11 // pred_check
          %p389 = pneg %p159
        $region30: #{tpu_custom_call.1} parent=11 // pred_check_branch
          %391 = sbr.rel (%p389) target = $region32
        $region31: #{tpu_custom_call.1} parent=11 // pred_region
          _
        $region32: #{tpu_custom_call.1} parent=11 // pred_fallthru
          _
        // Predicated region
        $region33: #{tpu_custom_call.1} parent=11 // pred_check
          %p392 = pneg %p180
        $region34: #{tpu_custom_call.1} parent=11 // pred_check_branch
          %394 = sbr.rel (%p392) target = $region36
        $region35: #{tpu_custom_call.1} parent=11 // pred_region
          %s396 = ssub.s32 8192, 8192
          %397 = vsyncadd [#allocation10], %s396
          %s398 = sshll.u32 [#allocation11], 4
          %s399 = int_to_ptr.vmem [resolvable:$true] %s398
          %404 = dma.hbm_to_vmem [thread:$0]  %s6, 8192, %s399, [#allocation10], 256, 256, 16
        $region36: #{tpu_custom_call.1} parent=11 // pred_fallthru
          _
        // Predicated region
        $region37: #{tpu_custom_call.1} parent=11 // pred_check
          %p405 = pneg %p201
        $region38: #{tpu_custom_call.1} parent=11 // pred_check_branch
          %407 = sbr.rel (%p405) target = $region40
        $region39: #{tpu_custom_call.1} parent=11 // pred_region
          _
        $region40: #{tpu_custom_call.1} parent=11 // pred_fallthru
          _
        // Predicated region
        $region41: #{tpu_custom_call.1} parent=11 // pred_check
          %p408 = pneg %p222
        $region42: #{tpu_custom_call.1} parent=11 // pred_check_branch
          %410 = sbr.rel (%p408) target = $region44
        $region43: #{tpu_custom_call.1} parent=11 // pred_region
          %s412 = ssub.s32 4096, 4096
          %413 = vsyncadd [#allocation13], %s412
          %s414 = sshll.u32 [#allocation12], 4
          %s415 = int_to_ptr.vmem [resolvable:$true] %s414
          %420 = dma.hbm_to_vmem [thread:$0]  %s8, 4096, %s415, [#allocation13], 128, 128, 8
        $region44: #{tpu_custom_call.1} parent=11 // pred_fallthru
          _
        // Predicated region
        $region45: #{tpu_custom_call.1} parent=11 // pred_check
          %p421 = pneg %p243
        $region46: #{tpu_custom_call.1} parent=11 // pred_check_branch
          %423 = sbr.rel (%p421) target = $region48
        $region47: #{tpu_custom_call.1} parent=11 // pred_region
          _
        $region48: #{tpu_custom_call.1} parent=11 // pred_fallthru
          _
        // Predicated region
        $region49: #{tpu_custom_call.1} parent=11 // pred_check
          %p424 = pneg %p264
        $region50: #{tpu_custom_call.1} parent=11 // pred_check_branch
          %426 = sbr.rel (%p424) target = $region52
        $region51: #{tpu_custom_call.1} parent=11 // pred_region
          _
        $region52: #{tpu_custom_call.1} parent=11 // pred_fallthru
          _
        // Predicated region
        $region53: #{tpu_custom_call.1} parent=11 // pred_check
          %p427 = pneg %p285
        $region54: #{tpu_custom_call.1} parent=11 // pred_check_branch
          %429 = sbr.rel (%p427) target = $region56
        $region55: #{tpu_custom_call.1} parent=11 // pred_region
          _
        $region56: #{tpu_custom_call.1} parent=11 // pred_fallthru
          _
        // Predicated region
        $region57: #{tpu_custom_call.1} parent=11 // pred_check
          %p430 = pneg %p306
        $region58: #{tpu_custom_call.1} parent=11 // pred_check_branch
          %432 = sbr.rel (%p430) target = $region60
        $region59: #{tpu_custom_call.1} parent=11 // pred_region
          %s434 = ssub.s32 4096, 4096
          %435 = vsyncadd [#allocation13], %s434
          %s436 = sshll.u32 [#allocation14], 4
          %s437 = int_to_ptr.vmem [resolvable:$true] %s436
          %442 = dma.hbm_to_vmem [thread:$0]  %s12, 4096, %s437, [#allocation13], 128, 128, 8
        $region60: #{tpu_custom_call.1} parent=11 // pred_fallthru
          _
      $region12: #{tpu_custom_call.1} parent=5 // pred_fallthru
        _
      %p443 = scmp.lt.s32.totalorder %s28, 2
      // Predicated region
      $region61: #{tpu_custom_call.1} parent=5 // pred_check
        %p444 = pneg %p443
      $region62: #{tpu_custom_call.1} parent=5 // pred_check_branch
        %446 = sbr.rel (%p444) target = $region64
      $region63: #{tpu_custom_call.1} parent=5 // pred_region
        // Predicated region
        $region65: #{tpu_custom_call.1} parent=63 // pred_check
          %p447 = pneg %p48
        $region66: #{tpu_custom_call.1} parent=63 // pred_check_branch
          %449 = sbr.rel (%p447) target = $region68
        $region67: #{tpu_custom_call.1} parent=63 // pred_region
          %s450 = sand.u32 %s38, 1
          %s451 = scalar_lea.sflag [#allocation4], %s450
          %s452 = sand.u32 %s38, 1
          %s453 = smul.addr %s452, 8
          %s454 = scalar_lea.vmem [#allocation3], %s453
          %s455 = smul.u32 2, %s28
          %s457 = ssub.s32 128, 128
          %458 = vsyncadd %s451, %s457
          %s459 = smul.addr %s455, 64
          %s460 = scalar_lea.hbm %s0, %s459
          %s461 = sshll.u32 %s454, 4
          %s462 = int_to_ptr.vmem [resolvable:$true] %s461
          %467 = dma.hbm_to_vmem [thread:$0]  %s460, 128, %s462, %s451, 64, 64, 4
        $region68: #{tpu_custom_call.1} parent=63 // pred_fallthru
          _
      $region64: #{tpu_custom_call.1} parent=5 // pred_fallthru
        _
      %p468 = scmp.le.s32.totalorder 1, %s28
      %p469 = scmp.lt.s32.totalorder %s28, 3
      %p470 = pnand %p468, %p469
      %p471 = pneg %p470
      // Predicated region
      $region69: #{tpu_custom_call.1} parent=5 // pred_check
        _
      $region70: #{tpu_custom_call.1} parent=5 // pred_check_branch
        %473 = sbr.rel (%p470) target = $region72
      $region71: #{tpu_custom_call.1} parent=5 // pred_region
        %s474 = ssub.s32 %s28, 1
        %s475 = sand.u32 %s41, 1
        %s476 = scalar_lea.sflag [#allocation4], %s475
        %s477 = sand.u32 %s41, 1
        %s478 = smul.addr %s477, 8
        %s479 = scalar_lea.vmem [#allocation3], %s478
        // Predicated region
        $region73: #{tpu_custom_call.1} parent=71 // pred_check
          %p480 = pneg %p54
        $region74: #{tpu_custom_call.1} parent=71 // pred_check_branch
          %482 = sbr.rel (%p480) target = $region76
        $region75: #{tpu_custom_call.1} parent=71 // pred_region
          %483 = dma.done %s476, 128
        $region76: #{tpu_custom_call.1} parent=71 // pred_fallthru
          _
        // Predicated region
        $region77: #{tpu_custom_call.1} parent=71 // pred_check
          %p484 = pneg %p75
        $region78: #{tpu_custom_call.1} parent=71 // pred_check_branch
          %486 = sbr.rel (%p484) target = $region80
        $region79: #{tpu_custom_call.1} parent=71 // pred_region
          %487 = dma.done [#allocation7], 512
        $region80: #{tpu_custom_call.1} parent=71 // pred_fallthru
          _
        // Predicated region
        $region81: #{tpu_custom_call.1} parent=71 // pred_check
          %p488 = pneg %p96
        $region82: #{tpu_custom_call.1} parent=71 // pred_check_branch
          %490 = sbr.rel (%p488) target = $region84
        $region83: #{tpu_custom_call.1} parent=71 // pred_region
          %491 = dma.done [#allocation7], 256
        $region84: #{tpu_custom_call.1} parent=71 // pred_fallthru
          _
        // Predicated region
        $region85: #{tpu_custom_call.1} parent=71 // pred_check
          %p492 = pneg %p117
        $region86: #{tpu_custom_call.1} parent=71 // pred_check_branch
          %494 = sbr.rel (%p492) target = $region88
        $region87: #{tpu_custom_call.1} parent=71 // pred_region
          %495 = dma.done [#allocation10], 2048
        $region88: #{tpu_custom_call.1} parent=71 // pred_fallthru
          _
        // Predicated region
        $region89: #{tpu_custom_call.1} parent=71 // pred_check
          %p496 = pneg %p180
        $region90: #{tpu_custom_call.1} parent=71 // pred_check_branch
          %498 = sbr.rel (%p496) target = $region92
        $region91: #{tpu_custom_call.1} parent=71 // pred_region
          %499 = dma.done [#allocation10], 8192
        $region92: #{tpu_custom_call.1} parent=71 // pred_fallthru
          _
        // Predicated region
        $region93: #{tpu_custom_call.1} parent=71 // pred_check
          %p500 = pneg %p222
        $region94: #{tpu_custom_call.1} parent=71 // pred_check_branch
          %502 = sbr.rel (%p500) target = $region96
        $region95: #{tpu_custom_call.1} parent=71 // pred_region
          %503 = dma.done [#allocation13], 4096
        $region96: #{tpu_custom_call.1} parent=71 // pred_fallthru
          _
        // Predicated region
        $region97: #{tpu_custom_call.1} parent=71 // pred_check
          %p504 = pneg %p306
        $region98: #{tpu_custom_call.1} parent=71 // pred_check_branch
          %506 = sbr.rel (%p504) target = $region100
        $region99: #{tpu_custom_call.1} parent=71 // pred_region
          %507 = dma.done [#allocation13], 4096
        $region100: #{tpu_custom_call.1} parent=71 // pred_fallthru
          _
        %s508 = sand.u32 %s41, 1
        %s509 = scalar_lea.sflag [#allocation4], %s508
        %s510 = sand.u32 %s41, 1
        %s511 = smul.addr %s510, 8
        %s512 = scalar_lea.vmem [#allocation3], %s511
        %p513 = pneg %p54
        %p514 = pneg %p51
        %p515 = pneg %p75
        %p516 = pneg %p72
        %p517 = pneg %p96
        %p518 = pneg %p93
        %p519 = pneg %p117
        %p520 = pneg %p114
        %p521 = pneg %p138
        %p522 = pneg %p135
        %p523 = pneg %p159
        %p524 = pneg %p156
        %p525 = pneg %p180
        %p526 = pneg %p177
        %p527 = pneg %p201
        %p528 = pneg %p198
        %p529 = pneg %p222
        %p530 = pneg %p219
        %p531 = pneg %p243
        %p532 = pneg %p240
        %p533 = pneg %p264
        %p534 = pneg %p261
        %p535 = pneg %p285
        %p536 = pneg %p282
        %p537 = pneg %p306
        %p538 = pneg %p303
        %p539 = pneg %p332
        %p540 = pneg %p329
        %s541 = sand.u32 %s319, 1
        %s542 = scalar_lea.sflag [#allocation5], %s541
        %s543 = sand.u32 %s319, 1
        %s544 = smul.addr %s543, 16
        %s545 = scalar_lea.vmem [#allocation15], %s544
        %s546 = smul.u32 2, %s33
        %s547 = smul.u32 2, %s33
        %v549 = vld [vmem:[%s479] sm:$0xf]
        %v550 = vld [vmem:[%s479 + $0x4] sm:$0xf]
        %v551 = vld [vmem:[#allocation9] sm:$0xff]
        %v552 = vld [vmem:[#allocation9 + $0x8] sm:$0xff]
        %v553 = vld [vmem:[#allocation9 + $0x10] sm:$0xff]
        %v554 = vld [vmem:[#allocation9 + $0x18] sm:$0xff]
        %v555 = vld [vmem:[#allocation9 + $0x20] sm:$0xff]
        %v556 = vld [vmem:[#allocation9 + $0x28] sm:$0xff]
        %v557 = vld [vmem:[#allocation9 + $0x30] sm:$0xff]
        %v558 = vld [vmem:[#allocation9 + $0x38] sm:$0xff]
        %v559 = vld [vmem:[#allocation9 + $0x40] sm:$0xff]
        %v560 = vld [vmem:[#allocation9 + $0x48] sm:$0xff]
        %v561 = vld [vmem:[#allocation9 + $0x50] sm:$0xff]
        %v562 = vld [vmem:[#allocation9 + $0x58] sm:$0xff]
        %v563 = vld [vmem:[#allocation9 + $0x60] sm:$0xff]
        %v564 = vld [vmem:[#allocation9 + $0x68] sm:$0xff]
        %v565 = vld [vmem:[#allocation9 + $0x70] sm:$0xff]
        %v566 = vld [vmem:[#allocation9 + $0x78] sm:$0xff]
        %v569 = vunpack.c.l.b16 %v549
        %v570 = vunpack.c.l.b16 %v550
        %v571 = vpack.c.b16 %v570, %v569
        %v589 = vunpack.c.l.b16 %v551
        %v590 = vunpack.c.h.b16 %v551
        %v591 = vunpack.c.l.b16 %v552
        %v592 = vunpack.c.h.b16 %v552
        %v593 = vunpack.c.l.b16 %v553
        %v594 = vunpack.c.h.b16 %v553
        %v595 = vunpack.c.l.b16 %v554
        %v596 = vunpack.c.h.b16 %v554
        %v597 = vunpack.c.l.b16 %v555
        %v598 = vunpack.c.h.b16 %v555
        %v599 = vunpack.c.l.b16 %v556
        %v600 = vunpack.c.h.b16 %v556
        %v601 = vunpack.c.l.b16 %v557
        %v602 = vunpack.c.h.b16 %v557
        %v603 = vunpack.c.l.b16 %v558
        %v604 = vunpack.c.h.b16 %v558
        %v605 = vunpack.c.l.b16 %v559
        %v606 = vunpack.c.h.b16 %v559
        %v607 = vunpack.c.l.b16 %v560
        %v608 = vunpack.c.h.b16 %v560
        %v609 = vunpack.c.l.b16 %v561
        %v610 = vunpack.c.h.b16 %v561
        %v611 = vunpack.c.l.b16 %v562
        %v612 = vunpack.c.h.b16 %v562
        %v613 = vunpack.c.l.b16 %v563
        %v614 = vunpack.c.h.b16 %v563
        %v615 = vunpack.c.l.b16 %v564
        %v616 = vunpack.c.h.b16 %v564
        %v617 = vunpack.c.l.b16 %v565
        %v618 = vunpack.c.h.b16 %v565
        %v619 = vunpack.c.l.b16 %v566
        %v620 = vunpack.c.h.b16 %v566
        %v621 = vpack.c.b16 %v591, %v589
        %v622 = vpack.c.b16 %v592, %v590
        %v623 = vpack.c.b16 %v595, %v593
        %v624 = vpack.c.b16 %v596, %v594
        %v625 = vpack.c.b16 %v599, %v597
        %v626 = vpack.c.b16 %v600, %v598
        %v627 = vpack.c.b16 %v603, %v601
        %v628 = vpack.c.b16 %v604, %v602
        %v629 = vpack.c.b16 %v607, %v605
        %v630 = vpack.c.b16 %v608, %v606
        %v631 = vpack.c.b16 %v611, %v609
        %v632 = vpack.c.b16 %v612, %v610
        %v633 = vpack.c.b16 %v615, %v613
        %v634 = vpack.c.b16 %v616, %v614
        %v635 = vpack.c.b16 %v619, %v617
        %v636 = vpack.c.b16 %v620, %v618
        %653 = vmatprep.subr.bf16.mxu0 %v636
        %654 = vmatpush1.bf16.msra.mxu0 %v635
        %655 = vmatprep.subr.bf16.mxu0 %v634
        %656 = vmatpush1.bf16.msra.mxu0 %v633
        %657 = vmatprep.subr.bf16.mxu0 %v632
        %658 = vmatpush1.bf16.msra.mxu0 %v631
        %659 = vmatprep.subr.bf16.mxu0 %v630
        %660 = vmatpush1.bf16.msra.mxu0 %v629
        %661 = vmatprep.subr.bf16.mxu0 %v628
        %662 = vmatpush1.bf16.msra.mxu0 %v627
        %663 = vmatprep.subr.bf16.mxu0 %v626
        %664 = vmatpush1.bf16.msra.mxu0 %v625
        %665 = vmatprep.subr.bf16.mxu0 %v624
        %666 = vmatpush1.bf16.msra.mxu0 %v623
        %667 = vmatprep.subr.bf16.mxu0 %v622
        %668 = vmatpush1.bf16.msra.mxu0 %v621
        %669 = vmatprep.subr.bf16.mxu0 0
        %670 = vmatpush2.bf16.msra.mxu0 0
        %671 = vmatprep.subr.bf16.mxu0 0
        %672 = vmatpush2.bf16.msra.mxu0 0
        %673 = vmatprep.subr.bf16.mxu0 0
        %674 = vmatpush2.bf16.msra.mxu0 0
        %675 = vmatprep.subr.bf16.mxu0 0
        %676 = vmatpush2.bf16.msra.mxu0 0
        %677 = vmatprep.subr.bf16.mxu0 0
        %678 = vmatpush2.bf16.msra.mxu0 0
        %679 = vmatprep.subr.bf16.mxu0 0
        %680 = vmatpush2.bf16.msra.mxu0 0
        %681 = vmatprep.subr.bf16.mxu0 0
        %682 = vmatpush2.bf16.msra.mxu0 0
        %683 = vmatprep.subr.bf16.mxu0 0
        %684 = vmatpush2.bf16.msra.mxu0 0
        %685 = vmatprep.mubr.bf16.mxu0 0
        %686 = vmatmul.mubr.bf16.gmra.mxu0 %v571
        %v687 = vpop.f32.mrf.mxu0
        %v688 = vadd.f32 0.0, %v687
        %v689 = vpop.f32.mrf.mxu0
        %v690 = vadd.f32 0.0, %v689
        %v691 = vpop.f32.mrf.mxu0
        %v692 = vadd.f32 0.0, %v691
        %v693 = vpop.f32.mrf.mxu0
        %v694 = vadd.f32 0.0, %v693
        %695 = vdwg.mxu0
        %v696 = vld [vmem:[%s4] sm:$0x3]
        %v697 = vld [vmem:[%s5] sm:$0x3]
        %v698 = vadd.f32 %v688, %v690
        %699 = vadd.xlane.f32.xlu0 %v698
        %v700 = vpop.xlane.xlu0 %699
        %v701 = vadd.f32 %v692, %v694
        %702 = vadd.xlane.f32.xlu0 %v701
        %v703 = vpop.xlane.xlu0 %702
        %v704 = vrcp.pop 256.0
        %v705 = vmul.f32 %v700, %v704
        %v706 = vmul.f32 %v703, %v704
        %v707 = vsub.f32 %v688, %v705
        %v708 = vsub.f32 %v690, %v705
        %v709 = vsub.f32 %v692, %v706
        %v710 = vsub.f32 %v694, %v706
        %v711 = vmul.f32 %v707, %v707
        %v712 = vmul.f32 %v708, %v708
        %v713 = vmul.f32 %v709, %v709
        %v714 = vmul.f32 %v710, %v710
        %v715 = vadd.f32 %v711, %v712
        %716 = vadd.xlane.f32.xlu0 %v715
        %v717 = vpop.xlane.xlu0 %716
        %v718 = vadd.f32 %v713, %v714
        %719 = vadd.xlane.f32.xlu0 %v718
        %v720 = vpop.xlane.xlu0 %719
        %v721 = vmul.f32 %v717, %v704
        %v722 = vmul.f32 %v720, %v704
        %v723 = vadd.f32 %v721, 1e-06
        %v724 = vadd.f32 %v722, 1e-06
        %v725 = vrsqrt.pop %v723
        %v726 = vrsqrt.pop %v724
        %v727 = vmul.f32 %v707, %v725
        %v728 = vmul.f32 %v708, %v725
        %v729 = vmul.f32 %v709, %v726
        %v730 = vmul.f32 %v710, %v726
        %v732 = vlaneseq
        %v733 = vshrl.u32 %v732, 7
        %v734 = vsub.s32 0, %v733
        %v735 = vrot.slane %v696, %v734
        %v736 = vlaneseq
        %v737 = vshrl.u32 %v736, 7
        %v738 = vsub.s32 1, %v737
        %v739 = vrot.slane %v696, %v738
        %v742 = vmul.f32 %v727, %v735
        %v743 = vmul.f32 %v728, %v739
        %v744 = vmul.f32 %v729, %v735
        %v745 = vmul.f32 %v730, %v739
        %v747 = vlaneseq
        %v748 = vshrl.u32 %v747, 7
        %v749 = vsub.s32 0, %v748
        %v750 = vrot.slane %v697, %v749
        %v751 = vlaneseq
        %v752 = vshrl.u32 %v751, 7
        %v753 = vsub.s32 1, %v752
        %v754 = vrot.slane %v697, %v753
        %v757 = vadd.f32 %v742, %v750
        %v758 = vadd.f32 %v743, %v754
        %v759 = vadd.f32 %v744, %v750
        %v760 = vadd.f32 %v745, %v754
        %v761 = vpack.c.bf16 %v759, %v757
        %v762 = vpack.c.bf16 %v760, %v758
        %v763 = vld [vmem:[#allocation11] sm:$0xff]
        %v764 = vld [vmem:[#allocation11 + $0x8] sm:$0xff]
        %v765 = vld [vmem:[#allocation11 + $0x10] sm:$0xff]
        %v766 = vld [vmem:[#allocation11 + $0x18] sm:$0xff]
        %v767 = vld [vmem:[#allocation11 + $0x20] sm:$0xff]
        %v768 = vld [vmem:[#allocation11 + $0x28] sm:$0xff]
        %v769 = vld [vmem:[#allocation11 + $0x30] sm:$0xff]
        %v770 = vld [vmem:[#allocation11 + $0x38] sm:$0xff]
        %v771 = vld [vmem:[#allocation11 + $0x40] sm:$0xff]
        %v772 = vld [vmem:[#allocation11 + $0x48] sm:$0xff]
        %v773 = vld [vmem:[#allocation11 + $0x50] sm:$0xff]
        %v774 = vld [vmem:[#allocation11 + $0x58] sm:$0xff]
        %v775 = vld [vmem:[#allocation11 + $0x60] sm:$0xff]
        %v776 = vld [vmem:[#allocation11 + $0x68] sm:$0xff]
        %v777 = vld [vmem:[#allocation11 + $0x70] sm:$0xff]
        %v778 = vld [vmem:[#allocation11 + $0x78] sm:$0xff]
        %v779 = vld [vmem:[#allocation11 + $0x80] sm:$0xff]
        %v780 = vld [vmem:[#allocation11 + $0x88] sm:$0xff]
        %v781 = vld [vmem:[#allocation11 + $0x90] sm:$0xff]
        %v782 = vld [vmem:[#allocation11 + $0x98] sm:$0xff]
        %v783 = vld [vmem:[#allocation11 + $0xa0] sm:$0xff]
        %v784 = vld [vmem:[#allocation11 + $0xa8] sm:$0xff]
        %v785 = vld [vmem:[#allocation11 + $0xb0] sm:$0xff]
        %v786 = vld [vmem:[#allocation11 + $0xb8] sm:$0xff]
        %v787 = vld [vmem:[#allocation11 + $0xc0] sm:$0xff]
        %v788 = vld [vmem:[#allocation11 + $0xc8] sm:$0xff]
        %v789 = vld [vmem:[#allocation11 + $0xd0] sm:$0xff]
        %v790 = vld [vmem:[#allocation11 + $0xd8] sm:$0xff]
        %v791 = vld [vmem:[#allocation11 + $0xe0] sm:$0xff]
        %v792 = vld [vmem:[#allocation11 + $0xe8] sm:$0xff]
        %v793 = vld [vmem:[#allocation11 + $0xf0] sm:$0xff]
        %v794 = vld [vmem:[#allocation11 + $0xf8] sm:$0xff]
        %v795 = vld [vmem:[#allocation11 + $0x100] sm:$0xff]
        %v796 = vld [vmem:[#allocation11 + $0x108] sm:$0xff]
        %v797 = vld [vmem:[#allocation11 + $0x110] sm:$0xff]
        %v798 = vld [vmem:[#allocation11 + $0x118] sm:$0xff]
        %v799 = vld [vmem:[#allocation11 + $0x120] sm:$0xff]
        %v800 = vld [vmem:[#allocation11 + $0x128] sm:$0xff]
        %v801 = vld [vmem:[#allocation11 + $0x130] sm:$0xff]
        %v802 = vld [vmem:[#allocation11 + $0x138] sm:$0xff]
        %v803 = vld [vmem:[#allocation11 + $0x140] sm:$0xff]
        %v804 = vld [vmem:[#allocation11 + $0x148] sm:$0xff]
        %v805 = vld [vmem:[#allocation11 + $0x150] sm:$0xff]
        %v806 = vld [vmem:[#allocation11 + $0x158] sm:$0xff]
        %v807 = vld [vmem:[#allocation11 + $0x160] sm:$0xff]
        %v808 = vld [vmem:[#allocation11 + $0x168] sm:$0xff]
        %v809 = vld [vmem:[#allocation11 + $0x170] sm:$0xff]
        %v810 = vld [vmem:[#allocation11 + $0x178] sm:$0xff]
        %v811 = vld [vmem:[#allocation11 + $0x180] sm:$0xff]
        %v812 = vld [vmem:[#allocation11 + $0x188] sm:$0xff]
        %v813 = vld [vmem:[#allocation11 + $0x190] sm:$0xff]
        %v814 = vld [vmem:[#allocation11 + $0x198] sm:$0xff]
        %v815 = vld [vmem:[#allocation11 + $0x1a0] sm:$0xff]
        %v816 = vld [vmem:[#allocation11 + $0x1a8] sm:$0xff]
        %v817 = vld [vmem:[#allocation11 + $0x1b0] sm:$0xff]
        %v818 = vld [vmem:[#allocation11 + $0x1b8] sm:$0xff]
        %v819 = vld [vmem:[#allocation11 + $0x1c0] sm:$0xff]
        %v820 = vld [vmem:[#allocation11 + $0x1c8] sm:$0xff]
        %v821 = vld [vmem:[#allocation11 + $0x1d0] sm:$0xff]
        %v822 = vld [vmem:[#allocation11 + $0x1d8] sm:$0xff]
        %v823 = vld [vmem:[#allocation11 + $0x1e0] sm:$0xff]
        %v824 = vld [vmem:[#allocation11 + $0x1e8] sm:$0xff]
        %v825 = vld [vmem:[#allocation11 + $0x1f0] sm:$0xff]
        %v826 = vld [vmem:[#allocation11 + $0x1f8] sm:$0xff]
        %v827 = vld [vmem:[%s7] sm:$0xf]
        %v829 = vlaneseq
        %v830 = vshrl.u32 %v829, 7
        %v831 = vsub.s32 0, %v830
        %v832 = vrot.slane %v827, %v831
        %v833 = vlaneseq
        %v834 = vshrl.u32 %v833, 7
        %v835 = vsub.s32 1, %v834
        %v836 = vrot.slane %v827, %v835
        %v837 = vlaneseq
        %v838 = vshrl.u32 %v837, 7
        %v839 = vsub.s32 2, %v838
        %v840 = vrot.slane %v827, %v839
        %v841 = vlaneseq
        %v842 = vshrl.u32 %v841, 7
        %v843 = vsub.s32 3, %v842
        %v844 = vrot.slane %v827, %v843
        %v913 = vunpack.c.l.b16 %v763
        %v914 = vunpack.c.h.b16 %v763
        %v915 = vunpack.c.l.b16 %v764
        %v916 = vunpack.c.h.b16 %v764
        %v917 = vunpack.c.l.b16 %v765
        %v918 = vunpack.c.h.b16 %v765
        %v919 = vunpack.c.l.b16 %v766
        %v920 = vunpack.c.h.b16 %v766
        %v921 = vunpack.c.l.b16 %v767
        %v922 = vunpack.c.h.b16 %v767
        %v923 = vunpack.c.l.b16 %v768
        %v924 = vunpack.c.h.b16 %v768
        %v925 = vunpack.c.l.b16 %v769
        %v926 = vunpack.c.h.b16 %v769
        %v927 = vunpack.c.l.b16 %v770
        %v928 = vunpack.c.h.b16 %v770
        %v929 = vunpack.c.l.b16 %v771
        %v930 = vunpack.c.h.b16 %v771
        %v931 = vunpack.c.l.b16 %v772
        %v932 = vunpack.c.h.b16 %v772
        %v933 = vunpack.c.l.b16 %v773
        %v934 = vunpack.c.h.b16 %v773
        %v935 = vunpack.c.l.b16 %v774
        %v936 = vunpack.c.h.b16 %v774
        %v937 = vunpack.c.l.b16 %v775
        %v938 = vunpack.c.h.b16 %v775
        %v939 = vunpack.c.l.b16 %v776
        %v940 = vunpack.c.h.b16 %v776
        %v941 = vunpack.c.l.b16 %v777
        %v942 = vunpack.c.h.b16 %v777
        %v943 = vunpack.c.l.b16 %v778
        %v944 = vunpack.c.h.b16 %v778
        %v945 = vunpack.c.l.b16 %v779
        %v946 = vunpack.c.h.b16 %v779
        %v947 = vunpack.c.l.b16 %v780
        %v948 = vunpack.c.h.b16 %v780
        %v949 = vunpack.c.l.b16 %v781
        %v950 = vunpack.c.h.b16 %v781
        %v951 = vunpack.c.l.b16 %v782
        %v952 = vunpack.c.h.b16 %v782
        %v953 = vunpack.c.l.b16 %v783
        %v954 = vunpack.c.h.b16 %v783
        %v955 = vunpack.c.l.b16 %v784
        %v956 = vunpack.c.h.b16 %v784
        %v957 = vunpack.c.l.b16 %v785
        %v958 = vunpack.c.h.b16 %v785
        %v959 = vunpack.c.l.b16 %v786
        %v960 = vunpack.c.h.b16 %v786
        %v961 = vunpack.c.l.b16 %v787
        %v962 = vunpack.c.h.b16 %v787
        %v963 = vunpack.c.l.b16 %v788
        %v964 = vunpack.c.h.b16 %v788
        %v965 = vunpack.c.l.b16 %v789
        %v966 = vunpack.c.h.b16 %v789
        %v967 = vunpack.c.l.b16 %v790
        %v968 = vunpack.c.h.b16 %v790
        %v969 = vunpack.c.l.b16 %v791
        %v970 = vunpack.c.h.b16 %v791
        %v971 = vunpack.c.l.b16 %v792
        %v972 = vunpack.c.h.b16 %v792
        %v973 = vunpack.c.l.b16 %v793
        %v974 = vunpack.c.h.b16 %v793
        %v975 = vunpack.c.l.b16 %v794
        %v976 = vunpack.c.h.b16 %v794
        %v977 = vunpack.c.l.b16 %v795
        %v978 = vunpack.c.h.b16 %v795
        %v979 = vunpack.c.l.b16 %v796
        %v980 = vunpack.c.h.b16 %v796
        %v981 = vunpack.c.l.b16 %v797
        %v982 = vunpack.c.h.b16 %v797
        %v983 = vunpack.c.l.b16 %v798
        %v984 = vunpack.c.h.b16 %v798
        %v985 = vunpack.c.l.b16 %v799
        %v986 = vunpack.c.h.b16 %v799
        %v987 = vunpack.c.l.b16 %v800
        %v988 = vunpack.c.h.b16 %v800
        %v989 = vunpack.c.l.b16 %v801
        %v990 = vunpack.c.h.b16 %v801
        %v991 = vunpack.c.l.b16 %v802
        %v992 = vunpack.c.h.b16 %v802
        %v993 = vunpack.c.l.b16 %v803
        %v994 = vunpack.c.h.b16 %v803
        %v995 = vunpack.c.l.b16 %v804
        %v996 = vunpack.c.h.b16 %v804
        %v997 = vunpack.c.l.b16 %v805
        %v998 = vunpack.c.h.b16 %v805
        %v999 = vunpack.c.l.b16 %v806
        %v1000 = vunpack.c.h.b16 %v806
        %v1001 = vunpack.c.l.b16 %v807
        %v1002 = vunpack.c.h.b16 %v807
        %v1003 = vunpack.c.l.b16 %v808
        %v1004 = vunpack.c.h.b16 %v808
        %v1005 = vunpack.c.l.b16 %v809
        %v1006 = vunpack.c.h.b16 %v809
        %v1007 = vunpack.c.l.b16 %v810
        %v1008 = vunpack.c.h.b16 %v810
        %v1009 = vunpack.c.l.b16 %v811
        %v1010 = vunpack.c.h.b16 %v811
        %v1011 = vunpack.c.l.b16 %v812
        %v1012 = vunpack.c.h.b16 %v812
        %v1013 = vunpack.c.l.b16 %v813
        %v1014 = vunpack.c.h.b16 %v813
        %v1015 = vunpack.c.l.b16 %v814
        %v1016 = vunpack.c.h.b16 %v814
        %v1017 = vunpack.c.l.b16 %v815
        %v1018 = vunpack.c.h.b16 %v815
        %v1019 = vunpack.c.l.b16 %v816
        %v1020 = vunpack.c.h.b16 %v816
        %v1021 = vunpack.c.l.b16 %v817
        %v1022 = vunpack.c.h.b16 %v817
        %v1023 = vunpack.c.l.b16 %v818
        %v1024 = vunpack.c.h.b16 %v818
        %v1025 = vunpack.c.l.b16 %v819
        %v1026 = vunpack.c.h.b16 %v819
        %v1027 = vunpack.c.l.b16 %v820
        %v1028 = vunpack.c.h.b16 %v820
        %v1029 = vunpack.c.l.b16 %v821
        %v1030 = vunpack.c.h.b16 %v821
        %v1031 = vunpack.c.l.b16 %v822
        %v1032 = vunpack.c.h.b16 %v822
        %v1033 = vunpack.c.l.b16 %v823
        %v1034 = vunpack.c.h.b16 %v823
        %v1035 = vunpack.c.l.b16 %v824
        %v1036 = vunpack.c.h.b16 %v824
        %v1037 = vunpack.c.l.b16 %v825
        %v1038 = vunpack.c.h.b16 %v825
        %v1039 = vunpack.c.l.b16 %v826
        %v1040 = vunpack.c.h.b16 %v826
        %v1041 = vpack.c.b16 %v917, %v913
        %v1042 = vpack.c.b16 %v918, %v914
        %v1043 = vpack.c.b16 %v919, %v915
        %v1044 = vpack.c.b16 %v920, %v916
        %v1045 = vpack.c.b16 %v925, %v921
        %v1046 = vpack.c.b16 %v926, %v922
        %v1047 = vpack.c.b16 %v927, %v923
        %v1048 = vpack.c.b16 %v928, %v924
        %v1049 = vpack.c.b16 %v933, %v929
        %v1050 = vpack.c.b16 %v934, %v930
        %v1051 = vpack.c.b16 %v935, %v931
        %v1052 = vpack.c.b16 %v936, %v932
        %v1053 = vpack.c.b16 %v941, %v937
        %v1054 = vpack.c.b16 %v942, %v938
        %v1055 = vpack.c.b16 %v943, %v939
        %v1056 = vpack.c.b16 %v944, %v940
        %v1057 = vpack.c.b16 %v949, %v945
        %v1058 = vpack.c.b16 %v950, %v946
        %v1059 = vpack.c.b16 %v951, %v947
        %v1060 = vpack.c.b16 %v952, %v948
        %v1061 = vpack.c.b16 %v957, %v953
        %v1062 = vpack.c.b16 %v958, %v954
        %v1063 = vpack.c.b16 %v959, %v955
        %v1064 = vpack.c.b16 %v960, %v956
        %v1065 = vpack.c.b16 %v965, %v961
        %v1066 = vpack.c.b16 %v966, %v962
        %v1067 = vpack.c.b16 %v967, %v963
        %v1068 = vpack.c.b16 %v968, %v964
        %v1069 = vpack.c.b16 %v973, %v969
        %v1070 = vpack.c.b16 %v974, %v970
        %v1071 = vpack.c.b16 %v975, %v971
        %v1072 = vpack.c.b16 %v976, %v972
        %v1073 = vpack.c.b16 %v981, %v977
        %v1074 = vpack.c.b16 %v982, %v978
        %v1075 = vpack.c.b16 %v983, %v979
        %v1076 = vpack.c.b16 %v984, %v980
        %v1077 = vpack.c.b16 %v989, %v985
        %v1078 = vpack.c.b16 %v990, %v986
        %v1079 = vpack.c.b16 %v991, %v987
        %v1080 = vpack.c.b16 %v992, %v988
        %v1081 = vpack.c.b16 %v997, %v993
        %v1082 = vpack.c.b16 %v998, %v994
        %v1083 = vpack.c.b16 %v999, %v995
        %v1084 = vpack.c.b16 %v1000, %v996
        %v1085 = vpack.c.b16 %v1005, %v1001
        %v1086 = vpack.c.b16 %v1006, %v1002
        %v1087 = vpack.c.b16 %v1007, %v1003
        %v1088 = vpack.c.b16 %v1008, %v1004
        %v1089 = vpack.c.b16 %v1013, %v1009
        %v1090 = vpack.c.b16 %v1014, %v1010
        %v1091 = vpack.c.b16 %v1015, %v1011
        %v1092 = vpack.c.b16 %v1016, %v1012
        %v1093 = vpack.c.b16 %v1021, %v1017
        %v1094 = vpack.c.b16 %v1022, %v1018
        %v1095 = vpack.c.b16 %v1023, %v1019
        %v1096 = vpack.c.b16 %v1024, %v1020
        %v1097 = vpack.c.b16 %v1029, %v1025
        %v1098 = vpack.c.b16 %v1030, %v1026
        %v1099 = vpack.c.b16 %v1031, %v1027
        %v1100 = vpack.c.b16 %v1032, %v1028
        %v1101 = vpack.c.b16 %v1037, %v1033
        %v1102 = vpack.c.b16 %v1038, %v1034
        %v1103 = vpack.c.b16 %v1039, %v1035
        %v1104 = vpack.c.b16 %v1040, %v1036
        %1169 = vmatprep.subr.bf16.mxu0 %v1070
        %1170 = vmatpush1.bf16.msra.mxu0 %v1069
        %1171 = vmatprep.subr.bf16.mxu0 %v1066
        %1172 = vmatpush1.bf16.msra.mxu0 %v1065
        %1173 = vmatprep.subr.bf16.mxu0 %v1062
        %1174 = vmatpush1.bf16.msra.mxu0 %v1061
        %1175 = vmatprep.subr.bf16.mxu0 %v1058
        %1176 = vmatpush1.bf16.msra.mxu0 %v1057
        %1177 = vmatprep.subr.bf16.mxu0 %v1054
        %1178 = vmatpush1.bf16.msra.mxu0 %v1053
        %1179 = vmatprep.subr.bf16.mxu0 %v1050
        %1180 = vmatpush1.bf16.msra.mxu0 %v1049
        %1181 = vmatprep.subr.bf16.mxu0 %v1046
        %1182 = vmatpush1.bf16.msra.mxu0 %v1045
        %1183 = vmatprep.subr.bf16.mxu0 %v1042
        %1184 = vmatpush1.bf16.msra.mxu0 %v1041
        %1185 = vmatprep.subr.bf16.mxu0 %v1102
        %1186 = vmatpush2.bf16.msra.mxu0 %v1101
        %1187 = vmatprep.subr.bf16.mxu0 %v1098
        %1188 = vmatpush2.bf16.msra.mxu0 %v1097
        %1189 = vmatprep.subr.bf16.mxu0 %v1094
        %1190 = vmatpush2.bf16.msra.mxu0 %v1093
        %1191 = vmatprep.subr.bf16.mxu0 %v1090
        %1192 = vmatpush2.bf16.msra.mxu0 %v1089
        %1193 = vmatprep.subr.bf16.mxu0 %v1086
        %1194 = vmatpush2.bf16.msra.mxu0 %v1085
        %1195 = vmatprep.subr.bf16.mxu0 %v1082
        %1196 = vmatpush2.bf16.msra.mxu0 %v1081
        %1197 = vmatprep.subr.bf16.mxu0 %v1078
        %1198 = vmatpush2.bf16.msra.mxu0 %v1077
        %1199 = vmatprep.subr.bf16.mxu0 %v1074
        %1200 = vmatpush2.bf16.msra.mxu0 %v1073
        %1201 = vmatprep.mubr.bf16.mxu0 %v762
        %1202 = vmatmul.mubr.bf16.gmra.mxu0 %v761
        %v1203 = vpop.f32.mrf.mxu0
        %v1204 = vadd.f32 %v832, %v1203
        %v1205 = vpop.f32.mrf.mxu0
        %v1206 = vadd.f32 %v836, %v1205
        %v1207 = vpop.f32.mrf.mxu0
        %v1208 = vadd.f32 %v832, %v1207
        %v1209 = vpop.f32.mrf.mxu0
        %v1210 = vadd.f32 %v836, %v1209
        %1211 = vdwg.mxu0
        %1212 = vmatprep.subr.bf16.mxu0 %v1072
        %1213 = vmatpush1.bf16.msra.mxu0 %v1071
        %1214 = vmatprep.subr.bf16.mxu0 %v1068
        %1215 = vmatpush1.bf16.msra.mxu0 %v1067
        %1216 = vmatprep.subr.bf16.mxu0 %v1064
        %1217 = vmatpush1.bf16.msra.mxu0 %v1063
        %1218 = vmatprep.subr.bf16.mxu0 %v1060
        %1219 = vmatpush1.bf16.msra.mxu0 %v1059
        %1220 = vmatprep.subr.bf16.mxu0 %v1056
        %1221 = vmatpush1.bf16.msra.mxu0 %v1055
        %1222 = vmatprep.subr.bf16.mxu0 %v1052
        %1223 = vmatpush1.bf16.msra.mxu0 %v1051
        %1224 = vmatprep.subr.bf16.mxu0 %v1048
        %1225 = vmatpush1.bf16.msra.mxu0 %v1047
        %1226 = vmatprep.subr.bf16.mxu0 %v1044
        %1227 = vmatpush1.bf16.msra.mxu0 %v1043
        %1228 = vmatprep.subr.bf16.mxu0 %v1104
        %1229 = vmatpush2.bf16.msra.mxu0 %v1103
        %1230 = vmatprep.subr.bf16.mxu0 %v1100
        %1231 = vmatpush2.bf16.msra.mxu0 %v1099
        %1232 = vmatprep.subr.bf16.mxu0 %v1096
        %1233 = vmatpush2.bf16.msra.mxu0 %v1095
        %1234 = vmatprep.subr.bf16.mxu0 %v1092
        %1235 = vmatpush2.bf16.msra.mxu0 %v1091
        %1236 = vmatprep.subr.bf16.mxu0 %v1088
        %1237 = vmatpush2.bf16.msra.mxu0 %v1087
        %1238 = vmatprep.subr.bf16.mxu0 %v1084
        %1239 = vmatpush2.bf16.msra.mxu0 %v1083
        %1240 = vmatprep.subr.bf16.mxu0 %v1080
        %1241 = vmatpush2.bf16.msra.mxu0 %v1079
        %1242 = vmatprep.subr.bf16.mxu0 %v1076
        %1243 = vmatpush2.bf16.msra.mxu0 %v1075
        %1244 = vmatprep.mubr.bf16.mxu0 %v762
        %1245 = vmatmul.mubr.bf16.gmra.mxu0 %v761
        %v1246 = vpop.f32.mrf.mxu0
        %v1247 = vadd.f32 %v840, %v1246
        %v1248 = vpop.f32.mrf.mxu0
        %v1249 = vadd.f32 %v844, %v1248
        %v1250 = vpop.f32.mrf.mxu0
        %v1251 = vadd.f32 %v840, %v1250
        %v1252 = vpop.f32.mrf.mxu0
        %v1253 = vadd.f32 %v844, %v1252
        %1254 = vdwg.mxu0
        %v1255 = vld [vmem:[#allocation6] sm:$0xff]
        %v1256 = vld [vmem:[#allocation6 + $0x8] sm:$0xff]
        %v1257 = vld [vmem:[#allocation6 + $0x10] sm:$0xff]
        %v1258 = vld [vmem:[#allocation6 + $0x18] sm:$0xff]
        %v1259 = vadd.f32 %v1204, %v1255
        %v1260 = vadd.f32 %v1206, %v1256
        %v1261 = vadd.f32 %v1208, %v1257
        %v1262 = vadd.f32 %v1210, %v1258
        %v1263 = vpack.c.bf16 %v1261, %v1259
        %v1264 = vpack.c.bf16 %v1262, %v1260
        %v1265 = vpack.c.bf16 %v1251, %v1247
        %v1266 = vpack.c.bf16 %v1253, %v1249
        %v1267 = vld [vmem:[#allocation8] sm:$0xff]
        %v1268 = vld [vmem:[#allocation8 + $0x8] sm:$0xff]
        %v1271 = vunpack.c.l.b16 %v1267
        %v1272 = vunpack.c.l.b16 %v1268
        %v1273 = vpack.c.b16 %v1272, %v1271
        %1275 = vmatprep.subr.bf16.mxu0 0
        %1276 = vmatpush1.bf16.xpose.msra.mxu0 0
        %1277 = vmatprep.subr.bf16.mxu0 0
        %1278 = vmatpush1.bf16.xpose.msra.mxu0 0
        %1279 = vmatprep.subr.bf16.mxu0 0
        %1280 = vmatpush1.bf16.xpose.msra.mxu0 0
        %1281 = vmatprep.subr.bf16.mxu0 0
        %1282 = vmatpush1.bf16.xpose.msra.mxu0 0
        %1283 = vmatprep.subr.bf16.mxu0 0
        %1284 = vmatpush1.bf16.xpose.msra.mxu0 0
        %1285 = vmatprep.subr.bf16.mxu0 0
        %1286 = vmatpush1.bf16.xpose.msra.mxu0 0
        %1287 = vmatprep.subr.bf16.mxu0 0
        %1288 = vmatpush1.bf16.xpose.msra.mxu0 0
        %1289 = vmatprep.subr.bf16.mxu0 0
        %1290 = vmatpush1.bf16.xpose.msra.mxu0 %v1263
        %1291 = vmatprep.subr.bf16.mxu0 0
        %1292 = vmatpush2.bf16.xpose.msra.mxu0 0
        %1293 = vmatprep.subr.bf16.mxu0 0
        %1294 = vmatpush2.bf16.xpose.msra.mxu0 0
        %1295 = vmatprep.subr.bf16.mxu0 0
        %1296 = vmatpush2.bf16.xpose.msra.mxu0 0
        %1297 = vmatprep.subr.bf16.mxu0 0
        %1298 = vmatpush2.bf16.xpose.msra.mxu0 0
        %1299 = vmatprep.subr.bf16.mxu0 0
        %1300 = vmatpush2.bf16.xpose.msra.mxu0 0
        %1301 = vmatprep.subr.bf16.mxu0 0
        %1302 = vmatpush2.bf16.xpose.msra.mxu0 0
        %1303 = vmatprep.subr.bf16.mxu0 0
        %1304 = vmatpush2.bf16.xpose.msra.mxu0 0
        %1305 = vmatprep.subr.bf16.mxu0 0
        %1306 = vmatpush2.bf16.xpose.msra.mxu0 0
        %1307 = vmatprep.mubr.bf16.mxu0 0
        %1308 = vmatmul.mubr.bf16.gmra.mxu0 %v1273
        %v1309 = vpop.f32.mrf.mxu0
        %v1310 = vadd.f32 0.0, %v1309
        %v1311 = vpop.f32.mrf.mxu0
        %v1312 = vpop.f32.mrf.mxu0
        %v1313 = vadd.f32 0.0, %v1312
        %v1314 = vpop.f32.mrf.mxu0
        %1315 = vdwg.mxu0
        %vm1316 = vcmask 130048
        %v1317 = vsel %vm1316, %v1310, -inf
        %1318 = vmax.xlane.f32.xlu0 %v1317
        %v1319 = vpop.xlane.xlu0 %1318
        %v1320 = vsel %vm1316, %v1313, -inf
        %1321 = vmax.xlane.f32.xlu0 %v1320
        %v1322 = vpop.xlane.xlu0 %1321
        %v1323 = vsub.f32 %v1310, %v1319
        %v1324 = vsub.f32 %v1313, %v1322
        %v1325 = vmul.f32 %v1323, 1.442695
        %v1326 = vpow.pop %v1325
        %v1327 = vmul.f32 %v1324, 1.442695
        %v1328 = vpow.pop %v1327
        %v1329 = vsel %vm1316, %v1326, 0.0
        %1330 = vadd.xlane.f32.xlu0 %v1329
        %v1331 = vpop.xlane.xlu0 %1330
        %v1332 = vsel %vm1316, %v1328, 0.0
        %1333 = vadd.xlane.f32.xlu0 %v1332
        %v1334 = vpop.xlane.xlu0 %1333
        %v1335 = vrcp.pop %v1331
        %v1336 = vrcp.pop %v1334
        %v1337 = vmul.f32 %v1326, %v1335
        %v1338 = vmul.f32 %v1328, %v1336
        %v1339 = vpack.c.bf16 %v1338, %v1337
        %v1341 = vsel %vm1316, %v1339, 0
        %1343 = vmatprep.subr.bf16.mxu0 0
        %1344 = vmatpush1.bf16.msra.mxu0 0
        %1345 = vmatprep.subr.bf16.mxu0 0
        %1346 = vmatpush1.bf16.msra.mxu0 0
        %1347 = vmatprep.subr.bf16.mxu0 0
        %1348 = vmatpush1.bf16.msra.mxu0 0
        %1349 = vmatprep.subr.bf16.mxu0 0
        %1350 = vmatpush1.bf16.msra.mxu0 0
        %1351 = vmatprep.subr.bf16.mxu0 0
        %1352 = vmatpush1.bf16.msra.mxu0 0
        %1353 = vmatprep.subr.bf16.mxu0 0
        %1354 = vmatpush1.bf16.msra.mxu0 0
        %1355 = vmatprep.subr.bf16.mxu0 0
        %1356 = vmatpush1.bf16.msra.mxu0 0
        %1357 = vmatprep.subr.bf16.mxu0 0
        %1358 = vmatpush1.bf16.msra.mxu0 %v1265
        %1359 = vmatprep.subr.bf16.mxu0 0
        %1360 = vmatpush2.bf16.msra.mxu0 0
        %1361 = vmatprep.subr.bf16.mxu0 0
        %1362 = vmatpush2.bf16.msra.mxu0 0
        %1363 = vmatprep.subr.bf16.mxu0 0
        %1364 = vmatpush2.bf16.msra.mxu0 0
        %1365 = vmatprep.subr.bf16.mxu0 0
        %1366 = vmatpush2.bf16.msra.mxu0 0
        %1367 = vmatprep.subr.bf16.mxu0 0
        %1368 = vmatpush2.bf16.msra.mxu0 0
        %1369 = vmatprep.subr.bf16.mxu0 0
        %1370 = vmatpush2.bf16.msra.mxu0 0
        %1371 = vmatprep.subr.bf16.mxu0 0
        %1372 = vmatpush2.bf16.msra.mxu0 0
        %1373 = vmatprep.subr.bf16.mxu0 0
        %1374 = vmatpush2.bf16.msra.mxu0 0
        %1375 = vmatprep.mubr.bf16.mxu0 0
        %1376 = vmatmul.mubr.bf16.gmra.mxu0 %v1341
        %v1377 = vpop.f32.mrf.mxu0
        %v1378 = vadd.f32 0.0, %v1377
        %v1379 = vpop.f32.mrf.mxu0
        %v1380 = vpop.f32.mrf.mxu0
        %v1381 = vadd.f32 0.0, %v1380
        %v1382 = vpop.f32.mrf.mxu0
        %1383 = vdwg.mxu0
        %1384 = vst [vmem:[#allocation2] sm:$0xff] %v1378
        %1385 = vst [vmem:[#allocation2 + $0x10] sm:$0xff] %v1381
        %v1386 = vunpack.c.h.b16 %v1267
        %v1387 = vunpack.c.h.b16 %v1268
        %v1388 = vpack.c.b16 %v1387, %v1386
        %1390 = vmatprep.subr.bf16.mxu0 0
        %1391 = vmatpush1.bf16.xpose.msra.mxu0 0
        %1392 = vmatprep.subr.bf16.mxu0 0
        %1393 = vmatpush1.bf16.xpose.msra.mxu0 0
        %1394 = vmatprep.subr.bf16.mxu0 0
        %1395 = vmatpush1.bf16.xpose.msra.mxu0 0
        %1396 = vmatprep.subr.bf16.mxu0 0
        %1397 = vmatpush1.bf16.xpose.msra.mxu0 0
        %1398 = vmatprep.subr.bf16.mxu0 0
        %1399 = vmatpush1.bf16.xpose.msra.mxu0 0
        %1400 = vmatprep.subr.bf16.mxu0 0
        %1401 = vmatpush1.bf16.xpose.msra.mxu0 0
        %1402 = vmatprep.subr.bf16.mxu0 0
        %1403 = vmatpush1.bf16.xpose.msra.mxu0 0
        %1404 = vmatprep.subr.bf16.mxu0 0
        %1405 = vmatpush1.bf16.xpose.msra.mxu0 %v1264
        %1406 = vmatprep.subr.bf16.mxu0 0
        %1407 = vmatpush2.bf16.xpose.msra.mxu0 0
        %1408 = vmatprep.subr.bf16.mxu0 0
        %1409 = vmatpush2.bf16.xpose.msra.mxu0 0
        %1410 = vmatprep.subr.bf16.mxu0 0
        %1411 = vmatpush2.bf16.xpose.msra.mxu0 0
        %1412 = vmatprep.subr.bf16.mxu0 0
        %1413 = vmatpush2.bf16.xpose.msra.mxu0 0
        %1414 = vmatprep.subr.bf16.mxu0 0
        %1415 = vmatpush2.bf16.xpose.msra.mxu0 0
        %1416 = vmatprep.subr.bf16.mxu0 0
        %1417 = vmatpush2.bf16.xpose.msra.mxu0 0
        %1418 = vmatprep.subr.bf16.mxu0 0
        %1419 = vmatpush2.bf16.xpose.msra.mxu0 0
        %1420 = vmatprep.subr.bf16.mxu0 0
        %1421 = vmatpush2.bf16.xpose.msra.mxu0 0
        %1422 = vmatprep.mubr.bf16.mxu0 0
        %1423 = vmatmul.mubr.bf16.gmra.mxu0 %v1388
        %v1424 = vpop.f32.mrf.mxu0
        %v1425 = vadd.f32 0.0, %v1424
        %v1426 = vpop.f32.mrf.mxu0
        %v1427 = vpop.f32.mrf.mxu0
        %v1428 = vadd.f32 0.0, %v1427
        %v1429 = vpop.f32.mrf.mxu0
        %1430 = vdwg.mxu0
        %v1431 = vsel %vm1316, %v1425, -inf
        %1432 = vmax.xlane.f32.xlu0 %v1431
        %v1433 = vpop.xlane.xlu0 %1432
        %v1434 = vsel %vm1316, %v1428, -inf
        %1435 = vmax.xlane.f32.xlu0 %v1434
        %v1436 = vpop.xlane.xlu0 %1435
        %v1437 = vsub.f32 %v1425, %v1433
        %v1438 = vsub.f32 %v1428, %v1436
        %v1439 = vmul.f32 %v1437, 1.442695
        %v1440 = vpow.pop %v1439
        %v1441 = vmul.f32 %v1438, 1.442695
        %v1442 = vpow.pop %v1441
        %v1443 = vsel %vm1316, %v1440, 0.0
        %1444 = vadd.xlane.f32.xlu0 %v1443
        %v1445 = vpop.xlane.xlu0 %1444
        %v1446 = vsel %vm1316, %v1442, 0.0
        %1447 = vadd.xlane.f32.xlu0 %v1446
        %v1448 = vpop.xlane.xlu0 %1447
        %v1449 = vrcp.pop %v1445
        %v1450 = vrcp.pop %v1448
        %v1451 = vmul.f32 %v1440, %v1449
        %v1452 = vmul.f32 %v1442, %v1450
        %v1453 = vpack.c.bf16 %v1452, %v1451
        %v1455 = vsel %vm1316, %v1453, 0
        %1457 = vmatprep.subr.bf16.mxu0 0
        %1458 = vmatpush1.bf16.msra.mxu0 0
        %1459 = vmatprep.subr.bf16.mxu0 0
        %1460 = vmatpush1.bf16.msra.mxu0 0
        %1461 = vmatprep.subr.bf16.mxu0 0
        %1462 = vmatpush1.bf16.msra.mxu0 0
        %1463 = vmatprep.subr.bf16.mxu0 0
        %1464 = vmatpush1.bf16.msra.mxu0 0
        %1465 = vmatprep.subr.bf16.mxu0 0
        %1466 = vmatpush1.bf16.msra.mxu0 0
        %1467 = vmatprep.subr.bf16.mxu0 0
        %1468 = vmatpush1.bf16.msra.mxu0 0
        %1469 = vmatprep.subr.bf16.mxu0 0
        %1470 = vmatpush1.bf16.msra.mxu0 0
        %1471 = vmatprep.subr.bf16.mxu0 0
        %1472 = vmatpush1.bf16.msra.mxu0 %v1266
        %1473 = vmatprep.subr.bf16.mxu0 0
        %1474 = vmatpush2.bf16.msra.mxu0 0
        %1475 = vmatprep.subr.bf16.mxu0 0
        %1476 = vmatpush2.bf16.msra.mxu0 0
        %1477 = vmatprep.subr.bf16.mxu0 0
        %1478 = vmatpush2.bf16.msra.mxu0 0
        %1479 = vmatprep.subr.bf16.mxu0 0
        %1480 = vmatpush2.bf16.msra.mxu0 0
        %1481 = vmatprep.subr.bf16.mxu0 0
        %1482 = vmatpush2.bf16.msra.mxu0 0
        %1483 = vmatprep.subr.bf16.mxu0 0
        %1484 = vmatpush2.bf16.msra.mxu0 0
        %1485 = vmatprep.subr.bf16.mxu0 0
        %1486 = vmatpush2.bf16.msra.mxu0 0
        %1487 = vmatprep.subr.bf16.mxu0 0
        %1488 = vmatpush2.bf16.msra.mxu0 0
        %1489 = vmatprep.mubr.bf16.mxu0 0
        %1490 = vmatmul.mubr.bf16.gmra.mxu0 %v1455
        %v1491 = vpop.f32.mrf.mxu0
        %v1492 = vadd.f32 0.0, %v1491
        %v1493 = vpop.f32.mrf.mxu0
        %v1494 = vpop.f32.mrf.mxu0
        %v1495 = vadd.f32 0.0, %v1494
        %v1496 = vpop.f32.mrf.mxu0
        %1497 = vdwg.mxu0
        %1498 = vst [vmem:[#allocation2 + $0x8] sm:$0xff] %v1492
        %1499 = vst [vmem:[#allocation2 + $0x18] sm:$0xff] %v1495
        %v1500 = vld [vmem:[#allocation2] sm:$0xff]
        %v1501 = vld [vmem:[#allocation2 + $0x8] sm:$0xff]
        %v1502 = vld [vmem:[#allocation2 + $0x10] sm:$0xff]
        %v1503 = vld [vmem:[#allocation2 + $0x18] sm:$0xff]
        %v1504 = vpack.c.bf16 %v1502, %v1500
        %v1505 = vpack.c.bf16 %v1503, %v1501
        %v1506 = vld [vmem:[#allocation12] sm:$0xff]
        %v1507 = vld [vmem:[#allocation12 + $0x8] sm:$0xff]
        %v1508 = vld [vmem:[#allocation12 + $0x10] sm:$0xff]
        %v1509 = vld [vmem:[#allocation12 + $0x18] sm:$0xff]
        %v1510 = vld [vmem:[#allocation12 + $0x20] sm:$0xff]
        %v1511 = vld [vmem:[#allocation12 + $0x28] sm:$0xff]
        %v1512 = vld [vmem:[#allocation12 + $0x30] sm:$0xff]
        %v1513 = vld [vmem:[#allocation12 + $0x38] sm:$0xff]
        %v1514 = vld [vmem:[#allocation12 + $0x40] sm:$0xff]
        %v1515 = vld [vmem:[#allocation12 + $0x48] sm:$0xff]
        %v1516 = vld [vmem:[#allocation12 + $0x50] sm:$0xff]
        %v1517 = vld [vmem:[#allocation12 + $0x58] sm:$0xff]
        %v1518 = vld [vmem:[#allocation12 + $0x60] sm:$0xff]
        %v1519 = vld [vmem:[#allocation12 + $0x68] sm:$0xff]
        %v1520 = vld [vmem:[#allocation12 + $0x70] sm:$0xff]
        %v1521 = vld [vmem:[#allocation12 + $0x78] sm:$0xff]
        %v1522 = vld [vmem:[#allocation12 + $0x80] sm:$0xff]
        %v1523 = vld [vmem:[#allocation12 + $0x88] sm:$0xff]
        %v1524 = vld [vmem:[#allocation12 + $0x90] sm:$0xff]
        %v1525 = vld [vmem:[#allocation12 + $0x98] sm:$0xff]
        %v1526 = vld [vmem:[#allocation12 + $0xa0] sm:$0xff]
        %v1527 = vld [vmem:[#allocation12 + $0xa8] sm:$0xff]
        %v1528 = vld [vmem:[#allocation12 + $0xb0] sm:$0xff]
        %v1529 = vld [vmem:[#allocation12 + $0xb8] sm:$0xff]
        %v1530 = vld [vmem:[#allocation12 + $0xc0] sm:$0xff]
        %v1531 = vld [vmem:[#allocation12 + $0xc8] sm:$0xff]
        %v1532 = vld [vmem:[#allocation12 + $0xd0] sm:$0xff]
        %v1533 = vld [vmem:[#allocation12 + $0xd8] sm:$0xff]
        %v1534 = vld [vmem:[#allocation12 + $0xe0] sm:$0xff]
        %v1535 = vld [vmem:[#allocation12 + $0xe8] sm:$0xff]
        %v1536 = vld [vmem:[#allocation12 + $0xf0] sm:$0xff]
        %v1537 = vld [vmem:[#allocation12 + $0xf8] sm:$0xff]
        %v1538 = vld [vmem:[%s9] sm:$0x3]
        %v1540 = vlaneseq
        %v1541 = vshrl.u32 %v1540, 7
        %v1542 = vsub.s32 0, %v1541
        %v1543 = vrot.slane %v1538, %v1542
        %v1544 = vlaneseq
        %v1545 = vshrl.u32 %v1544, 7
        %v1546 = vsub.s32 1, %v1545
        %v1547 = vrot.slane %v1538, %v1546
        %v1582 = vunpack.c.l.b16 %v1506
        %v1583 = vunpack.c.h.b16 %v1506
        %v1584 = vunpack.c.l.b16 %v1507
        %v1585 = vunpack.c.h.b16 %v1507
        %v1586 = vunpack.c.l.b16 %v1508
        %v1587 = vunpack.c.h.b16 %v1508
        %v1588 = vunpack.c.l.b16 %v1509
        %v1589 = vunpack.c.h.b16 %v1509
        %v1590 = vunpack.c.l.b16 %v1510
        %v1591 = vunpack.c.h.b16 %v1510
        %v1592 = vunpack.c.l.b16 %v1511
        %v1593 = vunpack.c.h.b16 %v1511
        %v1594 = vunpack.c.l.b16 %v1512
        %v1595 = vunpack.c.h.b16 %v1512
        %v1596 = vunpack.c.l.b16 %v1513
        %v1597 = vunpack.c.h.b16 %v1513
        %v1598 = vunpack.c.l.b16 %v1514
        %v1599 = vunpack.c.h.b16 %v1514
        %v1600 = vunpack.c.l.b16 %v1515
        %v1601 = vunpack.c.h.b16 %v1515
        %v1602 = vunpack.c.l.b16 %v1516
        %v1603 = vunpack.c.h.b16 %v1516
        %v1604 = vunpack.c.l.b16 %v1517
        %v1605 = vunpack.c.h.b16 %v1517
        %v1606 = vunpack.c.l.b16 %v1518
        %v1607 = vunpack.c.h.b16 %v1518
        %v1608 = vunpack.c.l.b16 %v1519
        %v1609 = vunpack.c.h.b16 %v1519
        %v1610 = vunpack.c.l.b16 %v1520
        %v1611 = vunpack.c.h.b16 %v1520
        %v1612 = vunpack.c.l.b16 %v1521
        %v1613 = vunpack.c.h.b16 %v1521
        %v1614 = vunpack.c.l.b16 %v1522
        %v1615 = vunpack.c.h.b16 %v1522
        %v1616 = vunpack.c.l.b16 %v1523
        %v1617 = vunpack.c.h.b16 %v1523
        %v1618 = vunpack.c.l.b16 %v1524
        %v1619 = vunpack.c.h.b16 %v1524
        %v1620 = vunpack.c.l.b16 %v1525
        %v1621 = vunpack.c.h.b16 %v1525
        %v1622 = vunpack.c.l.b16 %v1526
        %v1623 = vunpack.c.h.b16 %v1526
        %v1624 = vunpack.c.l.b16 %v1527
        %v1625 = vunpack.c.h.b16 %v1527
        %v1626 = vunpack.c.l.b16 %v1528
        %v1627 = vunpack.c.h.b16 %v1528
        %v1628 = vunpack.c.l.b16 %v1529
        %v1629 = vunpack.c.h.b16 %v1529
        %v1630 = vunpack.c.l.b16 %v1530
        %v1631 = vunpack.c.h.b16 %v1530
        %v1632 = vunpack.c.l.b16 %v1531
        %v1633 = vunpack.c.h.b16 %v1531
        %v1634 = vunpack.c.l.b16 %v1532
        %v1635 = vunpack.c.h.b16 %v1532
        %v1636 = vunpack.c.l.b16 %v1533
        %v1637 = vunpack.c.h.b16 %v1533
        %v1638 = vunpack.c.l.b16 %v1534
        %v1639 = vunpack.c.h.b16 %v1534
        %v1640 = vunpack.c.l.b16 %v1535
        %v1641 = vunpack.c.h.b16 %v1535
        %v1642 = vunpack.c.l.b16 %v1536
        %v1643 = vunpack.c.h.b16 %v1536
        %v1644 = vunpack.c.l.b16 %v1537
        %v1645 = vunpack.c.h.b16 %v1537
        %v1646 = vpack.c.b16 %v1584, %v1582
        %v1647 = vpack.c.b16 %v1585, %v1583
        %v1648 = vpack.c.b16 %v1588, %v1586
        %v1649 = vpack.c.b16 %v1589, %v1587
        %v1650 = vpack.c.b16 %v1592, %v1590
        %v1651 = vpack.c.b16 %v1593, %v1591
        %v1652 = vpack.c.b16 %v1596, %v1594
        %v1653 = vpack.c.b16 %v1597, %v1595
        %v1654 = vpack.c.b16 %v1600, %v1598
        %v1655 = vpack.c.b16 %v1601, %v1599
        %v1656 = vpack.c.b16 %v1604, %v1602
        %v1657 = vpack.c.b16 %v1605, %v1603
        %v1658 = vpack.c.b16 %v1608, %v1606
        %v1659 = vpack.c.b16 %v1609, %v1607
        %v1660 = vpack.c.b16 %v1612, %v1610
        %v1661 = vpack.c.b16 %v1613, %v1611
        %v1662 = vpack.c.b16 %v1616, %v1614
        %v1663 = vpack.c.b16 %v1617, %v1615
        %v1664 = vpack.c.b16 %v1620, %v1618
        %v1665 = vpack.c.b16 %v1621, %v1619
        %v1666 = vpack.c.b16 %v1624, %v1622
        %v1667 = vpack.c.b16 %v1625, %v1623
        %v1668 = vpack.c.b16 %v1628, %v1626
        %v1669 = vpack.c.b16 %v1629, %v1627
        %v1670 = vpack.c.b16 %v1632, %v1630
        %v1671 = vpack.c.b16 %v1633, %v1631
        %v1672 = vpack.c.b16 %v1636, %v1634
        %v1673 = vpack.c.b16 %v1637, %v1635
        %v1674 = vpack.c.b16 %v1640, %v1638
        %v1675 = vpack.c.b16 %v1641, %v1639
        %v1676 = vpack.c.b16 %v1644, %v1642
        %v1677 = vpack.c.b16 %v1645, %v1643
        %1710 = vmatprep.subr.bf16.mxu0 %v1661
        %1711 = vmatpush1.bf16.msra.mxu0 %v1660
        %1712 = vmatprep.subr.bf16.mxu0 %v1659
        %1713 = vmatpush1.bf16.msra.mxu0 %v1658
        %1714 = vmatprep.subr.bf16.mxu0 %v1657
        %1715 = vmatpush1.bf16.msra.mxu0 %v1656
        %1716 = vmatprep.subr.bf16.mxu0 %v1655
        %1717 = vmatpush1.bf16.msra.mxu0 %v1654
        %1718 = vmatprep.subr.bf16.mxu0 %v1653
        %1719 = vmatpush1.bf16.msra.mxu0 %v1652
        %1720 = vmatprep.subr.bf16.mxu0 %v1651
        %1721 = vmatpush1.bf16.msra.mxu0 %v1650
        %1722 = vmatprep.subr.bf16.mxu0 %v1649
        %1723 = vmatpush1.bf16.msra.mxu0 %v1648
        %1724 = vmatprep.subr.bf16.mxu0 %v1647
        %1725 = vmatpush1.bf16.msra.mxu0 %v1646
        %1726 = vmatprep.subr.bf16.mxu0 %v1677
        %1727 = vmatpush2.bf16.msra.mxu0 %v1676
        %1728 = vmatprep.subr.bf16.mxu0 %v1675
        %1729 = vmatpush2.bf16.msra.mxu0 %v1674
        %1730 = vmatprep.subr.bf16.mxu0 %v1673
        %1731 = vmatpush2.bf16.msra.mxu0 %v1672
        %1732 = vmatprep.subr.bf16.mxu0 %v1671
        %1733 = vmatpush2.bf16.msra.mxu0 %v1670
        %1734 = vmatprep.subr.bf16.mxu0 %v1669
        %1735 = vmatpush2.bf16.msra.mxu0 %v1668
        %1736 = vmatprep.subr.bf16.mxu0 %v1667
        %1737 = vmatpush2.bf16.msra.mxu0 %v1666
        %1738 = vmatprep.subr.bf16.mxu0 %v1665
        %1739 = vmatpush2.bf16.msra.mxu0 %v1664
        %1740 = vmatprep.subr.bf16.mxu0 %v1663
        %1741 = vmatpush2.bf16.msra.mxu0 %v1662
        %1742 = vmatprep.mubr.bf16.mxu0 %v1505
        %1743 = vmatmul.mubr.bf16.gmra.mxu0 %v1504
        %v1744 = vpop.f32.mrf.mxu0
        %v1745 = vadd.f32 %v1543, %v1744
        %v1746 = vpop.f32.mrf.mxu0
        %v1747 = vadd.f32 %v1547, %v1746
        %v1748 = vpop.f32.mrf.mxu0
        %v1749 = vadd.f32 %v1543, %v1748
        %v1750 = vpop.f32.mrf.mxu0
        %v1751 = vadd.f32 %v1547, %v1750
        %1752 = vdwg.mxu0
        %v1753 = vld [vmem:[%s10] sm:$0x3]
        %v1754 = vld [vmem:[%s11] sm:$0x3]
        %v1755 = vadd.f32 %v1745, %v1747
        %1756 = vadd.xlane.f32.xlu0 %v1755
        %v1757 = vpop.xlane.xlu0 %1756
        %v1758 = vadd.f32 %v1749, %v1751
        %1759 = vadd.xlane.f32.xlu0 %v1758
        %v1760 = vpop.xlane.xlu0 %1759
        %v1761 = vmul.f32 %v1757, %v704
        %v1762 = vmul.f32 %v1760, %v704
        %v1763 = vsub.f32 %v1745, %v1761
        %v1764 = vsub.f32 %v1747, %v1761
        %v1765 = vsub.f32 %v1749, %v1762
        %v1766 = vsub.f32 %v1751, %v1762
        %v1767 = vmul.f32 %v1763, %v1763
        %v1768 = vmul.f32 %v1764, %v1764
        %v1769 = vmul.f32 %v1765, %v1765
        %v1770 = vmul.f32 %v1766, %v1766
        %v1771 = vadd.f32 %v1767, %v1768
        %1772 = vadd.xlane.f32.xlu0 %v1771
        %v1773 = vpop.xlane.xlu0 %1772
        %v1774 = vadd.f32 %v1769, %v1770
        %1775 = vadd.xlane.f32.xlu0 %v1774
        %v1776 = vpop.xlane.xlu0 %1775
        %v1777 = vmul.f32 %v1773, %v704
        %v1778 = vmul.f32 %v1776, %v704
        %v1779 = vadd.f32 %v1777, 1e-06
        %v1780 = vadd.f32 %v1778, 1e-06
        %v1781 = vrsqrt.pop %v1779
        %v1782 = vrsqrt.pop %v1780
        %v1783 = vmul.f32 %v1763, %v1781
        %v1784 = vmul.f32 %v1764, %v1781
        %v1785 = vmul.f32 %v1765, %v1782
        %v1786 = vmul.f32 %v1766, %v1782
        %v1788 = vlaneseq
        %v1789 = vshrl.u32 %v1788, 7
        %v1790 = vsub.s32 0, %v1789
        %v1791 = vrot.slane %v1753, %v1790
        %v1792 = vlaneseq
        %v1793 = vshrl.u32 %v1792, 7
        %v1794 = vsub.s32 1, %v1793
        %v1795 = vrot.slane %v1753, %v1794
        %v1798 = vmul.f32 %v1783, %v1791
        %v1799 = vmul.f32 %v1784, %v1795
        %v1800 = vmul.f32 %v1785, %v1791
        %v1801 = vmul.f32 %v1786, %v1795
        %v1803 = vlaneseq
        %v1804 = vshrl.u32 %v1803, 7
        %v1805 = vsub.s32 0, %v1804
        %v1806 = vrot.slane %v1754, %v1805
        %v1807 = vlaneseq
        %v1808 = vshrl.u32 %v1807, 7
        %v1809 = vsub.s32 1, %v1808
        %v1810 = vrot.slane %v1754, %v1809
        %v1813 = vadd.f32 %v1798, %v1806
        %v1814 = vadd.f32 %v1799, %v1810
        %v1815 = vadd.f32 %v1800, %v1806
        %v1816 = vadd.f32 %v1801, %v1810
        %v1817 = vpack.c.bf16 %v1815, %v1813
        %v1818 = vpack.c.bf16 %v1816, %v1814
        %v1819 = vld [vmem:[#allocation14] sm:$0xff]
        %v1820 = vld [vmem:[#allocation14 + $0x8] sm:$0xff]
        %v1821 = vld [vmem:[#allocation14 + $0x10] sm:$0xff]
        %v1822 = vld [vmem:[#allocation14 + $0x18] sm:$0xff]
        %v1823 = vld [vmem:[#allocation14 + $0x20] sm:$0xff]
        %v1824 = vld [vmem:[#allocation14 + $0x28] sm:$0xff]
        %v1825 = vld [vmem:[#allocation14 + $0x30] sm:$0xff]
        %v1826 = vld [vmem:[#allocation14 + $0x38] sm:$0xff]
        %v1827 = vld [vmem:[#allocation14 + $0x40] sm:$0xff]
        %v1828 = vld [vmem:[#allocation14 + $0x48] sm:$0xff]
        %v1829 = vld [vmem:[#allocation14 + $0x50] sm:$0xff]
        %v1830 = vld [vmem:[#allocation14 + $0x58] sm:$0xff]
        %v1831 = vld [vmem:[#allocation14 + $0x60] sm:$0xff]
        %v1832 = vld [vmem:[#allocation14 + $0x68] sm:$0xff]
        %v1833 = vld [vmem:[#allocation14 + $0x70] sm:$0xff]
        %v1834 = vld [vmem:[#allocation14 + $0x78] sm:$0xff]
        %v1835 = vld [vmem:[#allocation14 + $0x80] sm:$0xff]
        %v1836 = vld [vmem:[#allocation14 + $0x88] sm:$0xff]
        %v1837 = vld [vmem:[#allocation14 + $0x90] sm:$0xff]
        %v1838 = vld [vmem:[#allocation14 + $0x98] sm:$0xff]
        %v1839 = vld [vmem:[#allocation14 + $0xa0] sm:$0xff]
        %v1840 = vld [vmem:[#allocation14 + $0xa8] sm:$0xff]
        %v1841 = vld [vmem:[#allocation14 + $0xb0] sm:$0xff]
        %v1842 = vld [vmem:[#allocation14 + $0xb8] sm:$0xff]
        %v1843 = vld [vmem:[#allocation14 + $0xc0] sm:$0xff]
        %v1844 = vld [vmem:[#allocation14 + $0xc8] sm:$0xff]
        %v1845 = vld [vmem:[#allocation14 + $0xd0] sm:$0xff]
        %v1846 = vld [vmem:[#allocation14 + $0xd8] sm:$0xff]
        %v1847 = vld [vmem:[#allocation14 + $0xe0] sm:$0xff]
        %v1848 = vld [vmem:[#allocation14 + $0xe8] sm:$0xff]
        %v1849 = vld [vmem:[#allocation14 + $0xf0] sm:$0xff]
        %v1850 = vld [vmem:[#allocation14 + $0xf8] sm:$0xff]
        %v1883 = vunpack.c.l.b16 %v1819
        %v1884 = vunpack.c.h.b16 %v1819
        %v1885 = vunpack.c.l.b16 %v1820
        %v1886 = vunpack.c.h.b16 %v1820
        %v1887 = vunpack.c.l.b16 %v1821
        %v1888 = vunpack.c.h.b16 %v1821
        %v1889 = vunpack.c.l.b16 %v1822
        %v1890 = vunpack.c.h.b16 %v1822
        %v1891 = vunpack.c.l.b16 %v1823
        %v1892 = vunpack.c.h.b16 %v1823
        %v1893 = vunpack.c.l.b16 %v1824
        %v1894 = vunpack.c.h.b16 %v1824
        %v1895 = vunpack.c.l.b16 %v1825
        %v1896 = vunpack.c.h.b16 %v1825
        %v1897 = vunpack.c.l.b16 %v1826
        %v1898 = vunpack.c.h.b16 %v1826
        %v1899 = vunpack.c.l.b16 %v1827
        %v1900 = vunpack.c.h.b16 %v1827
        %v1901 = vunpack.c.l.b16 %v1828
        %v1902 = vunpack.c.h.b16 %v1828
        %v1903 = vunpack.c.l.b16 %v1829
        %v1904 = vunpack.c.h.b16 %v1829
        %v1905 = vunpack.c.l.b16 %v1830
        %v1906 = vunpack.c.h.b16 %v1830
        %v1907 = vunpack.c.l.b16 %v1831
        %v1908 = vunpack.c.h.b16 %v1831
        %v1909 = vunpack.c.l.b16 %v1832
        %v1910 = vunpack.c.h.b16 %v1832
        %v1911 = vunpack.c.l.b16 %v1833
        %v1912 = vunpack.c.h.b16 %v1833
        %v1913 = vunpack.c.l.b16 %v1834
        %v1914 = vunpack.c.h.b16 %v1834
        %v1915 = vunpack.c.l.b16 %v1835
        %v1916 = vunpack.c.h.b16 %v1835
        %v1917 = vunpack.c.l.b16 %v1836
        %v1918 = vunpack.c.h.b16 %v1836
        %v1919 = vunpack.c.l.b16 %v1837
        %v1920 = vunpack.c.h.b16 %v1837
        %v1921 = vunpack.c.l.b16 %v1838
        %v1922 = vunpack.c.h.b16 %v1838
        %v1923 = vunpack.c.l.b16 %v1839
        %v1924 = vunpack.c.h.b16 %v1839
        %v1925 = vunpack.c.l.b16 %v1840
        %v1926 = vunpack.c.h.b16 %v1840
        %v1927 = vunpack.c.l.b16 %v1841
        %v1928 = vunpack.c.h.b16 %v1841
        %v1929 = vunpack.c.l.b16 %v1842
        %v1930 = vunpack.c.h.b16 %v1842
        %v1931 = vunpack.c.l.b16 %v1843
        %v1932 = vunpack.c.h.b16 %v1843
        %v1933 = vunpack.c.l.b16 %v1844
        %v1934 = vunpack.c.h.b16 %v1844
        %v1935 = vunpack.c.l.b16 %v1845
        %v1936 = vunpack.c.h.b16 %v1845
        %v1937 = vunpack.c.l.b16 %v1846
        %v1938 = vunpack.c.h.b16 %v1846
        %v1939 = vunpack.c.l.b16 %v1847
        %v1940 = vunpack.c.h.b16 %v1847
        %v1941 = vunpack.c.l.b16 %v1848
        %v1942 = vunpack.c.h.b16 %v1848
        %v1943 = vunpack.c.l.b16 %v1849
        %v1944 = vunpack.c.h.b16 %v1849
        %v1945 = vunpack.c.l.b16 %v1850
        %v1946 = vunpack.c.h.b16 %v1850
        %v1947 = vpack.c.b16 %v1885, %v1883
        %v1948 = vpack.c.b16 %v1886, %v1884
        %v1949 = vpack.c.b16 %v1889, %v1887
        %v1950 = vpack.c.b16 %v1890, %v1888
        %v1951 = vpack.c.b16 %v1893, %v1891
        %v1952 = vpack.c.b16 %v1894, %v1892
        %v1953 = vpack.c.b16 %v1897, %v1895
        %v1954 = vpack.c.b16 %v1898, %v1896
        %v1955 = vpack.c.b16 %v1901, %v1899
        %v1956 = vpack.c.b16 %v1902, %v1900
        %v1957 = vpack.c.b16 %v1905, %v1903
        %v1958 = vpack.c.b16 %v1906, %v1904
        %v1959 = vpack.c.b16 %v1909, %v1907
        %v1960 = vpack.c.b16 %v1910, %v1908
        %v1961 = vpack.c.b16 %v1913, %v1911
        %v1962 = vpack.c.b16 %v1914, %v1912
        %v1963 = vpack.c.b16 %v1917, %v1915
        %v1964 = vpack.c.b16 %v1918, %v1916
        %v1965 = vpack.c.b16 %v1921, %v1919
        %v1966 = vpack.c.b16 %v1922, %v1920
        %v1967 = vpack.c.b16 %v1925, %v1923
        %v1968 = vpack.c.b16 %v1926, %v1924
        %v1969 = vpack.c.b16 %v1929, %v1927
        %v1970 = vpack.c.b16 %v1930, %v1928
        %v1971 = vpack.c.b16 %v1933, %v1931
        %v1972 = vpack.c.b16 %v1934, %v1932
        %v1973 = vpack.c.b16 %v1937, %v1935
        %v1974 = vpack.c.b16 %v1938, %v1936
        %v1975 = vpack.c.b16 %v1941, %v1939
        %v1976 = vpack.c.b16 %v1942, %v1940
        %v1977 = vpack.c.b16 %v1945, %v1943
        %v1978 = vpack.c.b16 %v1946, %v1944
        %2011 = vmatprep.subr.bf16.mxu0 %v1962
        %2012 = vmatpush1.bf16.msra.mxu0 %v1961
        %2013 = vmatprep.subr.bf16.mxu0 %v1960
        %2014 = vmatpush1.bf16.msra.mxu0 %v1959
        %2015 = vmatprep.subr.bf16.mxu0 %v1958
        %2016 = vmatpush1.bf16.msra.mxu0 %v1957
        %2017 = vmatprep.subr.bf16.mxu0 %v1956
        %2018 = vmatpush1.bf16.msra.mxu0 %v1955
        %2019 = vmatprep.subr.bf16.mxu0 %v1954
        %2020 = vmatpush1.bf16.msra.mxu0 %v1953
        %2021 = vmatprep.subr.bf16.mxu0 %v1952
        %2022 = vmatpush1.bf16.msra.mxu0 %v1951
        %2023 = vmatprep.subr.bf16.mxu0 %v1950
        %2024 = vmatpush1.bf16.msra.mxu0 %v1949
        %2025 = vmatprep.subr.bf16.mxu0 %v1948
        %2026 = vmatpush1.bf16.msra.mxu0 %v1947
        %2027 = vmatprep.subr.bf16.mxu0 %v1978
        %2028 = vmatpush2.bf16.msra.mxu0 %v1977
        %2029 = vmatprep.subr.bf16.mxu0 %v1976
        %2030 = vmatpush2.bf16.msra.mxu0 %v1975
        %2031 = vmatprep.subr.bf16.mxu0 %v1974
        %2032 = vmatpush2.bf16.msra.mxu0 %v1973
        %2033 = vmatprep.subr.bf16.mxu0 %v1972
        %2034 = vmatpush2.bf16.msra.mxu0 %v1971
        %2035 = vmatprep.subr.bf16.mxu0 %v1970
        %2036 = vmatpush2.bf16.msra.mxu0 %v1969
        %2037 = vmatprep.subr.bf16.mxu0 %v1968
        %2038 = vmatpush2.bf16.msra.mxu0 %v1967
        %2039 = vmatprep.subr.bf16.mxu0 %v1966
        %2040 = vmatpush2.bf16.msra.mxu0 %v1965
        %2041 = vmatprep.subr.bf16.mxu0 %v1964
        %2042 = vmatpush2.bf16.msra.mxu0 %v1963
        %2043 = vmatprep.mubr.bf16.mxu0 %v1818
        %2044 = vmatmul.mubr.bf16.gmra.mxu0 %v1817
        %v2045 = vpop.f32.mrf.mxu0
        %v2046 = vadd.f32 0.0, %v2045
        %v2047 = vpop.f32.mrf.mxu0
        %v2048 = vadd.f32 0.0, %v2047
        %v2049 = vpop.f32.mrf.mxu0
        %v2050 = vadd.f32 0.0, %v2049
        %v2051 = vpop.f32.mrf.mxu0
        %v2052 = vadd.f32 0.0, %v2051
        %2053 = vdwg.mxu0
        %v2054 = vpack.c.bf16 %v2050, %v2046
        %v2055 = vpack.c.bf16 %v2052, %v2048
        %v2058 = vunpack.c.l.b16 %v2054
        %v2059 = vunpack.c.l.b16 %v2055
        %v2060 = vunpack.c.h.b16 %v2054
        %v2061 = vunpack.c.h.b16 %v2055
        %v2062 = vpack.c.b16 %v2059, %v2058
        %v2063 = vpack.c.b16 %v2061, %v2060
        %2066 = vst [vmem:[%s545] sm:$0xff] %v2062
        %2067 = vst [vmem:[%s545 + $0x8] sm:$0xff] %v2063
        %s2068 = sand.u32 %s319, 1
        %s2069 = scalar_lea.sflag [#allocation5], %s2068
        %s2070 = sand.u32 %s319, 1
        %s2071 = smul.addr %s2070, 16
        %s2072 = scalar_lea.vmem [#allocation15], %s2071
        // Predicated region
        $region101: #{tpu_custom_call.1} parent=71 // pred_check
          %p2073 = pneg %p329
        $region102: #{tpu_custom_call.1} parent=71 // pred_check_branch
          %2075 = sbr.rel (%p2073) target = $region104
        $region103: #{tpu_custom_call.1} parent=71 // pred_region
          %s2076 = smul.u32 2, %s33
          %s2078 = ssub.s32 256, 256
          %2079 = vsyncadd %s2069, %s2078
          %s2080 = smul.addr %s2076, 2
          %s2081 = smul.addr %s2080, 64
          %s2082 = scalar_lea.hbm %s13, %s2081
          %s2083 = sshll.u32 %s2072, 4
          %s2084 = int_to_ptr.vmem [resolvable:$true] %s2083
          %2089 = dma.vmem_to_hbm [thread:$0]  %s2084, 256, %s2082, %s2069, 128, 128, 8
        $region104: #{tpu_custom_call.1} parent=71 // pred_fallthru
          _
      $region72: #{tpu_custom_call.1} parent=5 // pred_fallthru
        _
      %p2090 = scmp.le.s32.totalorder 2, %s28
      // Predicated region
      $region105: #{tpu_custom_call.1} parent=5 // pred_check
        %p2091 = pneg %p2090
      $region106: #{tpu_custom_call.1} parent=5 // pred_check_branch
        %2093 = sbr.rel (%p2091) target = $region108
      $region107: #{tpu_custom_call.1} parent=5 // pred_region
        %s2094 = ssub.s32 %s28, 2
        // Predicated region
        $region109: #{tpu_custom_call.1} parent=107 // pred_check
          %p2095 = pneg %p335
        $region110: #{tpu_custom_call.1} parent=107 // pred_check_branch
          %2097 = sbr.rel (%p2095) target = $region112
        $region111: #{tpu_custom_call.1} parent=107 // pred_region
          %s2098 = sand.u32 %s320, 1
          %s2099 = scalar_lea.sflag [#allocation5], %s2098
          %s2100 = sand.u32 %s320, 1
          %s2101 = smul.addr %s2100, 16
          %s2102 = scalar_lea.vmem [#allocation15], %s2101
          %2103 = dma.done %s2099, 256
        $region112: #{tpu_custom_call.1} parent=107 // pred_fallthru
          _
      $region108: #{tpu_custom_call.1} parent=5 // pred_fallthru
        _
    $region6: #{tpu_custom_call.1} parent=1 // loop_footer
      %s32 = sadd.s32 1, %s28
    $region7: #{tpu_custom_call.1} parent=1 // loop_footer_branch
      %27 = sbr.rel target = $region3
    $region8: #{tpu_custom_call.1} parent=1 // loop_exit
      _
    %2104 = vsyncpa [#allocation4], 1
    %s2105 = scalar_lea.sflag [#allocation4], 1
    %2106 = vsyncpa %s2105, 1
    %2107 = vsyncpa [#allocation7], 1
    %2108 = vsyncpa [#allocation10], 1
    %2109 = vsyncpa [#allocation13], 1
    %2110 = vsyncpa [#allocation5], 1
    %s2111 = scalar_lea.sflag [#allocation5], 1
    %2112 = vsyncpa %s2111, 1

</llo_original>
